<compile_context>
chip_gen: v6e
topology: v6e:2x2x1
jax: 0.10.0
libtpu: 0.0.40
codegen_flags: <defaults>
</compile_context>

<pallas_src>
import jax
import jax.numpy as jnp
from jax import lax
from jax.experimental import pallas as pl
from jax.experimental.pallas import tpu as pltpu


# ----------------------------- Pallas kernel --------------------------------
def recurrent_kernel(x_emb_ref,   # (S, TB, E)   bf16 embeddings, time-major
                     h0_ref,      # (TB, H)      f32 initial hidden state
                     c0_ref,      # (TB, H)      f32 initial cell state
                     wih_ref,     # (E, 4H)      bf16 input->gates weights (permuted, transposed)
                     bg_ref,      # (1, 4H)      f32 folded LSTM biases (b_ih + b_hh, permuted)
                     whh_ref,     # (H, 4H)      f32 hidden->gates weights (permuted, transposed)
                     w1_ref,      # (H, 4H)      bf16 pred layer-1 weights (transposed)
                     b1_ref,      # (1, 4H)      f32 pred layer-1 bias
                     w2_ref,      # (4H, 128)    bf16 pred layer-2 weights (transposed, lane-padded)
                     b2_ref,      # (1, 128)     f32 pred layer-2 bias (lane-padded)
                     out_ref,     # (TB, 128)    f32 lane-dense output block
                     xg_ref):     # (S, TB, 4H)  f32 VMEM scratch: gate pre-activations
    seq_len, tb, emb = x_emb_ref.shape
    hidden = h0_ref.shape[1]
    h4 = 4 * hidden

    # --- Pre-loop: input projection for the whole sequence in ONE MXU matmul. ---
    # Cast to f32 before merging (S, TB, E) -> (S*TB, E) so the sublane merge is
    # 8-aligned irrespective of bf16 packing, then back to bf16 for a 1-pass MXU op.
    x_flat = x_emb_ref[...].astype(jnp.float32).reshape(seq_len * tb, emb)
    gates_all = jnp.dot(x_flat.astype(jnp.bfloat16), wih_ref[...],
                        preferred_element_type=jnp.float32) + bg_ref[...]
    xg_ref[...] = gates_all.reshape(seq_len, tb, h4)

    # Recurrent weights resident and in f32 (keeps the recurrence close to the
    # f32 PyTorch reference; cost negligible at K=H=32).
    whh = whh_ref[...]

    def step(t, carry):
        h, c, m = carry
        # One MXU push per step: hidden recurrence only (input proj pre-computed).
        gates = xg_ref[t] + jnp.dot(h, whh, preferred_element_type=jnp.float32)  # (TB, 4H)
        # Gate order after the folded permutation: (f, i, g, o); f is lane-aligned with c/h/m.
        sig = jax.nn.sigmoid(gates)                         # one full-tile EUP pass
        f_g = sig[:, 0 * hidden:1 * hidden]
        i_g = sig[:, 1 * hidden:2 * hidden]
        o_g = sig[:, 3 * hidden:4 * hidden]
        g_g = jnp.tanh(gates[:, 2 * hidden:3 * hidden])     # tanh only on the g slice
        c_new = f_g * c + i_g * g_g
        h_new = o_g * jnp.tanh(c_new)
        m_new = jnp.maximum(m, h_new)                       # max-over-time (MaxPool1d(seq))
        return h_new, c_new, m_new

    h0 = h0_ref[...]
    c0 = c0_ref[...]
    m0 = jnp.full_like(h0, -jnp.inf)                        # fine for S >= 1
    unroll = True if seq_len <= 8 else 4                    # cap unroll -> bounded vreg pressure
    _, _, m_final = lax.fori_loop(0, seq_len, step, (h0, c0, m0), unroll=unroll)

    # Prediction MLP: Linear -> ReLU -> Linear -> Sigmoid (lane-dense final store).
    z1 = jnp.dot(m_final.astype(w1_ref.dtype), w1_ref[...],
                 preferred_element_type=jnp.float32) + b1_ref[...]
    z1 = jnp.maximum(z1, 0.0)
    z2 = jnp.dot(z1.astype(w2_ref.dtype), w2_ref[...],
                 preferred_element_type=jnp.float32) + b2_ref[...]
    out_ref[...] = jax.nn.sigmoid(z2).astype(out_ref.dtype)


# --------------------------- one-time param prep ------------------------------
def prepare_params(params, out_pad=128):
    """All constant weight prep done ONCE (not in the per-call forward path)."""
    H = params["w_hh"].shape[1]
    H4 = 4 * H
    # Gate permutation: PyTorch row order (i, f, g, o) -> kernel order (f, i, g, o),
    # folded into W_ih / W_hh / biases so the forget gate lands on lanes 0..H-1.
    perm = jnp.concatenate([
        jnp.arange(H, 2 * H),       # f
        jnp.arange(0, H),           # i
        jnp.arange(2 * H, 3 * H),   # g
        jnp.arange(3 * H, 4 * H),   # o
    ])
    emb_q = params["emb"].astype(jnp.bfloat16)                              # (V, E) gather source
    w_ih_t = params["w_ih"][perm].T.astype(jnp.bfloat16)                    # (E, 4H)
    b_gates = (params["b_ih"] + params["b_hh"])[perm][None, :].astype(jnp.float32)  # (1, 4H)
    w_hh_t = params["w_hh"][perm].T.astype(jnp.float32)                     # (H, 4H) f32 (drift control)
    w1_t = params["w1"].T.astype(jnp.bfloat16)                              # (H, 4H)
    b1 = params["b1"][None, :].astype(jnp.float32)                          # (1, 4H)
    w2_t = jnp.zeros((H4, out_pad), jnp.float32).at[:, :6].set(params["w2"].T).astype(jnp.bfloat16)
    b2 = jnp.zeros((1, out_pad), jnp.float32).at[:, :6].set(params["b2"][None, :])
    h0 = params["fst_h"][0].astype(jnp.float32)                             # (batch_size, H)
    c0 = params["fst_c"][0].astype(jnp.float32)
    return {"emb_q": emb_q, "w_ih_t": w_ih_t, "b_gates": b_gates, "w_hh_t": w_hh_t,
            "w1_t": w1_t, "b1": b1, "w2_t": w2_t, "b2": b2, "h0": h0, "c0": c0}


def _round_up(x, m):
    return ((x + m - 1) // m) * m


def _pick_batch_tile(B):
    """Batch tile / padded batch. For moderate B, split into 2 tiles so the
    'parallel' grid axis can engage both TensorCores on v7x."""
    if B <= 8:
        return 8, 8
    if B <= 512:
        tb = _round_up(_round_up(B, 2) // 2, 16)   # 16-multiple keeps bf16 blocks tileable
        return tb, 2 * tb
    return 128, _round_up(B, 128)


# ------------------------------ forward wrapper -------------------------------
def recurrent_model_forward(x_ids, prepped):
    """x_ids: (B, S) int32 token ids. Returns (B, 6) float32."""
    B, S = x_ids.shape
    H = prepped["w_hh_t"].shape[0]
    H4 = 4 * H
    E = prepped["emb_q"].shape[1]
    OUT_PAD = prepped["w2_t"].shape[1]

    # Per-call work: only the bf16 embedding gather (time-major) + batch padding.
    x_emb = jnp.take(prepped["emb_q"], x_ids.T, axis=0)          # (S, B, E) bf16

    TB, B_pad = _pick_batch_tile(B)
    pad_b = B_pad - B
    x_emb = jnp.pad(x_emb, ((0, 0), (0, pad_b), (0, 0)))          # (S, B_pad, E)
    h0 = jnp.pad(prepped["h0"][:B], ((0, pad_b), (0, 0)))          # (B_pad, H)
    c0 = jnp.pad(prepped["c0"][:B], ((0, pad_b), (0, 0)))          # (B_pad, H)

    flops = int(B_pad * (S * 2 * (E + H) * H4 + 2 * H * H4 + 2 * H4 * OUT_PAD))
    transcendentals = int(B_pad * (S * 6 * H + OUT_PAD))
    bytes_accessed = int(S * B_pad * E * 2 + B_pad * (2 * H + OUT_PAD) * 4
                         + (E * H4) * 2 + (H * H4) * 4 + (H * H4) * 2 + H4 * OUT_PAD * 2)

    grid = (B_pad // TB,)
    out_padded = pl.pallas_call(
        recurrent_kernel,
        out_shape=jax.ShapeDtypeStruct((B_pad, OUT_PAD), jnp.float32),
        grid=grid,
        in_specs=[
            pl.BlockSpec((S, TB, E), lambda b: (0, b, 0)),        # embeddings, batch-tiled
            pl.BlockSpec((TB, H), lambda b: (b, 0)),              # h0
            pl.BlockSpec((TB, H), lambda b: (b, 0)),              # c0
            pl.BlockSpec((E, H4), lambda b: (0, 0)),              # W_ih^T (shared)
            pl.BlockSpec((1, H4), lambda b: (0, 0)),              # folded gate bias
            pl.BlockSpec((H, H4), lambda b: (0, 0)),              # W_hh^T (shared, f32)
            pl.BlockSpec((H, H4), lambda b: (0, 0)),              # W1^T   (shared)
            pl.BlockSpec((1, H4), lambda b: (0, 0)),              # b1
            pl.BlockSpec((H4, OUT_PAD), lambda b: (0, 0)),        # W2^T lane-padded (shared)
            pl.BlockSpec((1, OUT_PAD), lambda b: (0, 0)),         # b2 lane-padded
        ],
        out_specs=pl.BlockSpec((TB, OUT_PAD), lambda b: (b, 0)),
        scratch_shapes=[pltpu.VMEM((S, TB, H4), jnp.float32)],    # per-block gate pre-activations
        compiler_params=pltpu.CompilerParams(
            dimension_semantics=("parallel",)),                   # >=2 grid steps -> both TCs on v7x
        cost_estimate=pl.CostEstimate(flops=flops,
                                      transcendentals=transcendentals,
                                      bytes_accessed=bytes_accessed),
    )(x_emb, h0, c0, prepped["w_ih_t"], prepped["b_gates"], prepped["w_hh_t"],
      prepped["w1_t"], prepped["b1"], prepped["w2_t"], prepped["b2"])

    return out_padded[:B, :6]


# --------------------------- deterministic params ----------------------------
def make_params(key, vocab_size, batch_size, pad_idx, emb_size=16, hidden_size=32):
    ks = jax.random.split(key, 12)
    H4 = 4 * hidden_size
    emb = jax.random.normal(ks[0], (vocab_size, emb_size), jnp.float32) * 0.1
    emb = emb.at[pad_idx].set(0.0)                             # padding_idx semantics
    params = {
        "emb": emb,
        "w_ih": jax.random.normal(ks[1], (H4, emb_size), jnp.float32) * 0.1,
        "w_hh": jax.random.normal(ks[2], (H4, hidden_size), jnp.float32) * 0.1,
        "b_ih": jax.random.normal(ks[3], (H4,), jnp.float32) * 0.1,
        "b_hh": jax.random.normal(ks[4], (H4,), jnp.float32) * 0.1,
        "w1": jax.random.normal(ks[5], (H4, hidden_size), jnp.float32) * 0.1,
        "b1": jax.random.normal(ks[6], (H4,), jnp.float32) * 0.1,
        "w2": jax.random.normal(ks[7], (6, H4), jnp.float32) * 0.1,
        "b2": jax.random.normal(ks[8], (6,), jnp.float32) * 0.1,
        "fst_h": jax.random.normal(ks[9], (1, batch_size, hidden_size), jnp.float32),
        "fst_c": jax.random.normal(ks[10], (1, batch_size, hidden_size), jnp.float32),
    }
    return params


if __name__ == "__main__":
    vocab_size = 50
    batch_size = 2
    seq_length = 8
    pad_idx = 0
    emb_size = 16
    hidden_size = 32

    key = jax.random.PRNGKey(0)
    pkey, xkey = jax.random.split(key)
    params = make_params(pkey, vocab_size, batch_size, pad_idx, emb_size, hidden_size)
    prepped = prepare_params(params)       # one-time constant prep, hoisted out of forward

    x = jax.random.randint(xkey, (batch_size, seq_length), 0, vocab_size, dtype=jnp.int32)

    out = recurrent_model_forward(x, prepped)
    out = jax.block_until_ready(out)
    assert out.shape == (batch_size, 6)
    assert bool(jnp.all(jnp.isfinite(out)))
    assert bool(jnp.all((out >= 0.0) & (out <= 1.0)))
    print("KERNEL_OK")
</pallas_src>

<mosaic_0001>
module attributes {stable_mosaic.version = 11 : i64} {
  func.func @recurrent_kernel(%arg0: i32, %arg1: memref<8x8x16xbf16, #tpu.memory_space<vmem>>, %arg2: memref<8x32xf32, #tpu.memory_space<vmem>>, %arg3: memref<8x32xf32, #tpu.memory_space<vmem>>, %arg4: memref<16x128xbf16, #tpu.memory_space<vmem>>, %arg5: memref<1x128xf32, #tpu.memory_space<vmem>>, %arg6: memref<32x128xf32, #tpu.memory_space<vmem>>, %arg7: memref<32x128xbf16, #tpu.memory_space<vmem>>, %arg8: memref<1x128xf32, #tpu.memory_space<vmem>>, %arg9: memref<128x128xbf16, #tpu.memory_space<vmem>>, %arg10: memref<1x128xf32, #tpu.memory_space<vmem>>, %arg11: memref<8x128xf32, #tpu.memory_space<vmem>>, %arg12: memref<8x8x128xf32, #tpu.memory_space<vmem>>) attributes {dimension_semantics = [#tpu.dimension_semantics<parallel>], iteration_bounds = array<i64: 1>, scalar_prefetch = 0 : i64, scratch_operands = 1 : i64, tpu.core_type = #tpu.core_type<tc>, window_params = [{transform_indices = @transform_0, window_bounds = array<i64: 8, 8, 16>}, {transform_indices = @transform_1, window_bounds = array<i64: 8, 32>}, {transform_indices = @transform_2, window_bounds = array<i64: 8, 32>}, {pipeline_mode = #tpu.pipeline_mode<synchronous>, transform_indices = @transform_3, window_bounds = array<i64: 16, 128>}, {pipeline_mode = #tpu.pipeline_mode<synchronous>, transform_indices = @transform_4, window_bounds = array<i64: 1, 128>}, {pipeline_mode = #tpu.pipeline_mode<synchronous>, transform_indices = @transform_5, window_bounds = array<i64: 32, 128>}, {pipeline_mode = #tpu.pipeline_mode<synchronous>, transform_indices = @transform_6, window_bounds = array<i64: 32, 128>}, {pipeline_mode = #tpu.pipeline_mode<synchronous>, transform_indices = @transform_7, window_bounds = array<i64: 1, 128>}, {pipeline_mode = #tpu.pipeline_mode<synchronous>, transform_indices = @transform_8, window_bounds = array<i64: 128, 128>}, {pipeline_mode = #tpu.pipeline_mode<synchronous>, transform_indices = @transform_9, window_bounds = array<i64: 1, 128>}, {transform_indices = @transform_10, window_bounds = array<i64: 8, 128>}]} {
    %c0 = arith.constant 0 : index
    %c0_0 = arith.constant 0 : index
    %c0_1 = arith.constant 0 : index
    %0 = vector.load %arg1[%c0, %c0_0, %c0_1] : memref<8x8x16xbf16, #tpu.memory_space<vmem>>, vector<8x8x16xbf16>
    %1 = arith.extf %0 : vector<8x8x16xbf16> to vector<8x8x16xf32>
    %2 = vector.shape_cast %1 : vector<8x8x16xf32> to vector<64x16xf32>
    %3 = arith.truncf %2 : vector<64x16xf32> to vector<64x16xbf16>
    %c0_2 = arith.constant 0 : index
    %c0_3 = arith.constant 0 : index
    %4 = vector.load %arg4[%c0_2, %c0_3] : memref<16x128xbf16, #tpu.memory_space<vmem>>, vector<16x128xbf16>
    %cst = arith.constant dense<0.000000e+00> : vector<64x128xf32>
    %5 = tpu.matmul %3, %4, %cst {dimension_numbers = #tpu.dot_dimension_numbers<[1], [0], [0], [1], [0, 0, 1, 1], [], []>} : vector<64x16xbf16>, vector<16x128xbf16>, vector<64x128xf32> -> vector<64x128xf32>
    %c0_4 = arith.constant 0 : index
    %c0_5 = arith.constant 0 : index
    %6 = vector.load %arg5[%c0_4, %c0_5] : memref<1x128xf32, #tpu.memory_space<vmem>>, vector<1x128xf32>
    %7 = vector.broadcast %6 : vector<1x128xf32> to vector<64x128xf32>
    %8 = arith.addf %5, %7 : vector<64x128xf32>
    %9 = vector.shape_cast %8 : vector<64x128xf32> to vector<8x8x128xf32>
    %c0_6 = arith.constant 0 : index
    %c0_7 = arith.constant 0 : index
    %c0_8 = arith.constant 0 : index
    %10 = vector.load %arg12[%c0_6, %c0_7, %c0_8] : memref<8x8x128xf32, #tpu.memory_space<vmem>>, vector<8x8x128xf32>
    tpu.vector_store %arg12[%c0_6, %c0_7, %c0_8], %9 {strides = array<i32>} : memref<8x8x128xf32, #tpu.memory_space<vmem>>, vector<8x8x128xf32>,
    %c0_9 = arith.constant 0 : index
    %c0_10 = arith.constant 0 : index
    %11 = vector.load %arg6[%c0_9, %c0_10] : memref<32x128xf32, #tpu.memory_space<vmem>>, vector<32x128xf32>
    %c0_11 = arith.constant 0 : index
    %c0_12 = arith.constant 0 : index
    %12 = vector.load %arg2[%c0_11, %c0_12] : memref<8x32xf32, #tpu.memory_space<vmem>>, vector<8x32xf32>
    %c0_13 = arith.constant 0 : index
    %c0_14 = arith.constant 0 : index
    %13 = vector.load %arg3[%c0_13, %c0_14] : memref<8x32xf32, #tpu.memory_space<vmem>>, vector<8x32xf32>
    %cst_15 = arith.constant 0xFF800000 : f32
    %14 = vector.broadcast %cst_15 : f32 to vector<8x32xf32>
    %c0_i32 = arith.constant 0 : i32
    %15 = arith.index_cast %c0_i32 : i32 to index
    %c0_16 = arith.constant 0 : index
    %c0_17 = arith.constant 0 : index
    %16 = vector.load %arg12[%15, %c0_16, %c0_17] : memref<8x8x128xf32, #tpu.memory_space<vmem>>, vector<1x8x128xf32>
    %17 = vector.shape_cast %16 : vector<1x8x128xf32> to vector<8x128xf32>
    %cst_18 = arith.constant dense<0.000000e+00> : vector<8x128xf32>
    %18 = tpu.matmul %12, %11, %cst_18 {dimension_numbers = #tpu.dot_dimension_numbers<[1], [0], [0], [1], [0, 0, 1, 1], [], []>} : vector<8x32xf32>, vector<32x128xf32>, vector<8x128xf32> -> vector<8x128xf32>
    %19 = arith.addf %17, %18 : vector<8x128xf32>
    %20 = arith.negf %19 : vector<8x128xf32>
    %21 = math.exp %20 : vector<8x128xf32>
    %cst_19 = arith.constant 1.000000e+00 : f32
    %22 = vector.broadcast %cst_19 : f32 to vector<8x128xf32>
    %23 = arith.addf %22, %21 : vector<8x128xf32>
    %24 = arith.divf %22, %23 : vector<8x128xf32>
    %25 = vector.extract_strided_slice %24 {offsets = [0, 0], sizes = [8, 32], strides = [1, 1]} : vector<8x128xf32> to vector<8x32xf32>
    %26 = vector.extract_strided_slice %24 {offsets = [0, 32], sizes = [8, 32], strides = [1, 1]} : vector<8x128xf32> to vector<8x32xf32>
    %27 = vector.extract_strided_slice %24 {offsets = [0, 96], sizes = [8, 32], strides = [1, 1]} : vector<8x128xf32> to vector<8x32xf32>
    %28 = vector.extract_strided_slice %19 {offsets = [0, 64], sizes = [8, 32], strides = [1, 1]} : vector<8x128xf32> to vector<8x32xf32>
    %29 = math.tanh %28 : vector<8x32xf32>
    %30 = arith.mulf %25, %13 : vector<8x32xf32>
    %31 = arith.mulf %26, %29 : vector<8x32xf32>
    %32 = arith.addf %30, %31 : vector<8x32xf32>
    %33 = math.tanh %32 : vector<8x32xf32>
    %34 = arith.mulf %27, %33 : vector<8x32xf32>
    %35 = arith.maximumf %14, %34 : vector<8x32xf32>
    %c1_i32 = arith.constant 1 : i32
    %36 = arith.index_cast %c1_i32 : i32 to index
    %c0_20 = arith.constant 0 : index
    %c0_21 = arith.constant 0 : index
    %37 = vector.load %arg12[%36, %c0_20, %c0_21] : memref<8x8x128xf32, #tpu.memory_space<vmem>>, vector<1x8x128xf32>
    %38 = vector.shape_cast %37 : vector<1x8x128xf32> to vector<8x128xf32>
    %cst_22 = arith.constant dense<0.000000e+00> : vector<8x128xf32>
    %39 = tpu.matmul %34, %11, %cst_22 {dimension_numbers = #tpu.dot_dimension_numbers<[1], [0], [0], [1], [0, 0, 1, 1], [], []>} : vector<8x32xf32>, vector<32x128xf32>, vector<8x128xf32> -> vector<8x128xf32>
    %40 = arith.addf %38, %39 : vector<8x128xf32>
    %41 = arith.negf %40 : vector<8x128xf32>
    %42 = math.exp %41 : vector<8x128xf32>
    %cst_23 = arith.constant 1.000000e+00 : f32
    %43 = vector.broadcast %cst_23 : f32 to vector<8x128xf32>
    %44 = arith.addf %43, %42 : vector<8x128xf32>
    %45 = arith.divf %43, %44 : vector<8x128xf32>
    %46 = vector.extract_strided_slice %45 {offsets = [0, 0], sizes = [8, 32], strides = [1, 1]} : vector<8x128xf32> to vector<8x32xf32>
    %47 = vector.extract_strided_slice %45 {offsets = [0, 32], sizes = [8, 32], strides = [1, 1]} : vector<8x128xf32> to vector<8x32xf32>
    %48 = vector.extract_strided_slice %45 {offsets = [0, 96], sizes = [8, 32], strides = [1, 1]} : vector<8x128xf32> to vector<8x32xf32>
    %49 = vector.extract_strided_slice %40 {offsets = [0, 64], sizes = [8, 32], strides = [1, 1]} : vector<8x128xf32> to vector<8x32xf32>
    %50 = math.tanh %49 : vector<8x32xf32>
    %51 = arith.mulf %46, %32 : vector<8x32xf32>
    %52 = arith.mulf %47, %50 : vector<8x32xf32>
    %53 = arith.addf %51, %52 : vector<8x32xf32>
    %54 = math.tanh %53 : vector<8x32xf32>
    %55 = arith.mulf %48, %54 : vector<8x32xf32>
    %56 = arith.maximumf %35, %55 : vector<8x32xf32>
    %c2_i32 = arith.constant 2 : i32
    %57 = arith.index_cast %c2_i32 : i32 to index
    %c0_24 = arith.constant 0 : index
    %c0_25 = arith.constant 0 : index
    %58 = vector.load %arg12[%57, %c0_24, %c0_25] : memref<8x8x128xf32, #tpu.memory_space<vmem>>, vector<1x8x128xf32>
    %59 = vector.shape_cast %58 : vector<1x8x128xf32> to vector<8x128xf32>
    %cst_26 = arith.constant dense<0.000000e+00> : vector<8x128xf32>
    %60 = tpu.matmul %55, %11, %cst_26 {dimension_numbers = #tpu.dot_dimension_numbers<[1], [0], [0], [1], [0, 0, 1, 1], [], []>} : vector<8x32xf32>, vector<32x128xf32>, vector<8x128xf32> -> vector<8x128xf32>
    %61 = arith.addf %59, %60 : vector<8x128xf32>
    %62 = arith.negf %61 : vector<8x128xf32>
    %63 = math.exp %62 : vector<8x128xf32>
    %cst_27 = arith.constant 1.000000e+00 : f32
    %64 = vector.broadcast %cst_27 : f32 to vector<8x128xf32>
    %65 = arith.addf %64, %63 : vector<8x128xf32>
    %66 = arith.divf %64, %65 : vector<8x128xf32>
    %67 = vector.extract_strided_slice %66 {offsets = [0, 0], sizes = [8, 32], strides = [1, 1]} : vector<8x128xf32> to vector<8x32xf32>
    %68 = vector.extract_strided_slice %66 {offsets = [0, 32], sizes = [8, 32], strides = [1, 1]} : vector<8x128xf32> to vector<8x32xf32>
    %69 = vector.extract_strided_slice %66 {offsets = [0, 96], sizes = [8, 32], strides = [1, 1]} : vector<8x128xf32> to vector<8x32xf32>
    %70 = vector.extract_strided_slice %61 {offsets = [0, 64], sizes = [8, 32], strides = [1, 1]} : vector<8x128xf32> to vector<8x32xf32>
    %71 = math.tanh %70 : vector<8x32xf32>
    %72 = arith.mulf %67, %53 : vector<8x32xf32>
    %73 = arith.mulf %68, %71 : vector<8x32xf32>
    %74 = arith.addf %72, %73 : vector<8x32xf32>
    %75 = math.tanh %74 : vector<8x32xf32>
    %76 = arith.mulf %69, %75 : vector<8x32xf32>
    %77 = arith.maximumf %56, %76 : vector<8x32xf32>
    %c3_i32 = arith.constant 3 : i32
    %78 = arith.index_cast %c3_i32 : i32 to index
    %c0_28 = arith.constant 0 : index
    %c0_29 = arith.constant 0 : index
    %79 = vector.load %arg12[%78, %c0_28, %c0_29] : memref<8x8x128xf32, #tpu.memory_space<vmem>>, vector<1x8x128xf32>
    %80 = vector.shape_cast %79 : vector<1x8x128xf32> to vector<8x128xf32>
    %cst_30 = arith.constant dense<0.000000e+00> : vector<8x128xf32>
    %81 = tpu.matmul %76, %11, %cst_30 {dimension_numbers = #tpu.dot_dimension_numbers<[1], [0], [0], [1], [0, 0, 1, 1], [], []>} : vector<8x32xf32>, vector<32x128xf32>, vector<8x128xf32> -> vector<8x128xf32>
    %82 = arith.addf %80, %81 : vector<8x128xf32>
    %83 = arith.negf %82 : vector<8x128xf32>
    %84 = math.exp %83 : vector<8x128xf32>
    %cst_31 = arith.constant 1.000000e+00 : f32
    %85 = vector.broadcast %cst_31 : f32 to vector<8x128xf32>
    %86 = arith.addf %85, %84 : vector<8x128xf32>
    %87 = arith.divf %85, %86 : vector<8x128xf32>
    %88 = vector.extract_strided_slice %87 {offsets = [0, 0], sizes = [8, 32], strides = [1, 1]} : vector<8x128xf32> to vector<8x32xf32>
    %89 = vector.extract_strided_slice %87 {offsets = [0, 32], sizes = [8, 32], strides = [1, 1]} : vector<8x128xf32> to vector<8x32xf32>
    %90 = vector.extract_strided_slice %87 {offsets = [0, 96], sizes = [8, 32], strides = [1, 1]} : vector<8x128xf32> to vector<8x32xf32>
    %91 = vector.extract_strided_slice %82 {offsets = [0, 64], sizes = [8, 32], strides = [1, 1]} : vector<8x128xf32> to vector<8x32xf32>
    %92 = math.tanh %91 : vector<8x32xf32>
    %93 = arith.mulf %88, %74 : vector<8x32xf32>
    %94 = arith.mulf %89, %92 : vector<8x32xf32>
    %95 = arith.addf %93, %94 : vector<8x32xf32>
    %96 = math.tanh %95 : vector<8x32xf32>
    %97 = arith.mulf %90, %96 : vector<8x32xf32>
    %98 = arith.maximumf %77, %97 : vector<8x32xf32>
    %c4_i32 = arith.constant 4 : i32
    %99 = arith.index_cast %c4_i32 : i32 to index
    %c0_32 = arith.constant 0 : index
    %c0_33 = arith.constant 0 : index
    %100 = vector.load %arg12[%99, %c0_32, %c0_33] : memref<8x8x128xf32, #tpu.memory_space<vmem>>, vector<1x8x128xf32>
    %101 = vector.shape_cast %100 : vector<1x8x128xf32> to vector<8x128xf32>
    %cst_34 = arith.constant dense<0.000000e+00> : vector<8x128xf32>
    %102 = tpu.matmul %97, %11, %cst_34 {dimension_numbers = #tpu.dot_dimension_numbers<[1], [0], [0], [1], [0, 0, 1, 1], [], []>} : vector<8x32xf32>, vector<32x128xf32>, vector<8x128xf32> -> vector<8x128xf32>
    %103 = arith.addf %101, %102 : vector<8x128xf32>
    %104 = arith.negf %103 : vector<8x128xf32>
    %105 = math.exp %104 : vector<8x128xf32>
    %cst_35 = arith.constant 1.000000e+00 : f32
    %106 = vector.broadcast %cst_35 : f32 to vector<8x128xf32>
    %107 = arith.addf %106, %105 : vector<8x128xf32>
    %108 = arith.divf %106, %107 : vector<8x128xf32>
    %109 = vector.extract_strided_slice %108 {offsets = [0, 0], sizes = [8, 32], strides = [1, 1]} : vector<8x128xf32> to vector<8x32xf32>
    %110 = vector.extract_strided_slice %108 {offsets = [0, 32], sizes = [8, 32], strides = [1, 1]} : vector<8x128xf32> to vector<8x32xf32>
    %111 = vector.extract_strided_slice %108 {offsets = [0, 96], sizes = [8, 32], strides = [1, 1]} : vector<8x128xf32> to vector<8x32xf32>
    %112 = vector.extract_strided_slice %103 {offsets = [0, 64], sizes = [8, 32], strides = [1, 1]} : vector<8x128xf32> to vector<8x32xf32>
    %113 = math.tanh %112 : vector<8x32xf32>
    %114 = arith.mulf %109, %95 : vector<8x32xf32>
    %115 = arith.mulf %110, %113 : vector<8x32xf32>
    %116 = arith.addf %114, %115 : vector<8x32xf32>
    %117 = math.tanh %116 : vector<8x32xf32>
    %118 = arith.mulf %111, %117 : vector<8x32xf32>
    %119 = arith.maximumf %98, %118 : vector<8x32xf32>
    %c5_i32 = arith.constant 5 : i32
    %120 = arith.index_cast %c5_i32 : i32 to index
    %c0_36 = arith.constant 0 : index
    %c0_37 = arith.constant 0 : index
    %121 = vector.load %arg12[%120, %c0_36, %c0_37] : memref<8x8x128xf32, #tpu.memory_space<vmem>>, vector<1x8x128xf32>
    %122 = vector.shape_cast %121 : vector<1x8x128xf32> to vector<8x128xf32>
    %cst_38 = arith.constant dense<0.000000e+00> : vector<8x128xf32>
    %123 = tpu.matmul %118, %11, %cst_38 {dimension_numbers = #tpu.dot_dimension_numbers<[1], [0], [0], [1], [0, 0, 1, 1], [], []>} : vector<8x32xf32>, vector<32x128xf32>, vector<8x128xf32> -> vector<8x128xf32>
    %124 = arith.addf %122, %123 : vector<8x128xf32>
    %125 = arith.negf %124 : vector<8x128xf32>
    %126 = math.exp %125 : vector<8x128xf32>
    %cst_39 = arith.constant 1.000000e+00 : f32
    %127 = vector.broadcast %cst_39 : f32 to vector<8x128xf32>
    %128 = arith.addf %127, %126 : vector<8x128xf32>
    %129 = arith.divf %127, %128 : vector<8x128xf32>
    %130 = vector.extract_strided_slice %129 {offsets = [0, 0], sizes = [8, 32], strides = [1, 1]} : vector<8x128xf32> to vector<8x32xf32>
    %131 = vector.extract_strided_slice %129 {offsets = [0, 32], sizes = [8, 32], strides = [1, 1]} : vector<8x128xf32> to vector<8x32xf32>
    %132 = vector.extract_strided_slice %129 {offsets = [0, 96], sizes = [8, 32], strides = [1, 1]} : vector<8x128xf32> to vector<8x32xf32>
    %133 = vector.extract_strided_slice %124 {offsets = [0, 64], sizes = [8, 32], strides = [1, 1]} : vector<8x128xf32> to vector<8x32xf32>
    %134 = math.tanh %133 : vector<8x32xf32>
    %135 = arith.mulf %130, %116 : vector<8x32xf32>
    %136 = arith.mulf %131, %134 : vector<8x32xf32>
    %137 = arith.addf %135, %136 : vector<8x32xf32>
    %138 = math.tanh %137 : vector<8x32xf32>
    %139 = arith.mulf %132, %138 : vector<8x32xf32>
    %140 = arith.maximumf %119, %139 : vector<8x32xf32>
    %c6_i32 = arith.constant 6 : i32
    %141 = arith.index_cast %c6_i32 : i32 to index
    %c0_40 = arith.constant 0 : index
    %c0_41 = arith.constant 0 : index
    %142 = vector.load %arg12[%141, %c0_40, %c0_41] : memref<8x8x128xf32, #tpu.memory_space<vmem>>, vector<1x8x128xf32>
    %143 = vector.shape_cast %142 : vector<1x8x128xf32> to vector<8x128xf32>
    %cst_42 = arith.constant dense<0.000000e+00> : vector<8x128xf32>
    %144 = tpu.matmul %139, %11, %cst_42 {dimension_numbers = #tpu.dot_dimension_numbers<[1], [0], [0], [1], [0, 0, 1, 1], [], []>} : vector<8x32xf32>, vector<32x128xf32>, vector<8x128xf32> -> vector<8x128xf32>
    %145 = arith.addf %143, %144 : vector<8x128xf32>
    %146 = arith.negf %145 : vector<8x128xf32>
    %147 = math.exp %146 : vector<8x128xf32>
    %cst_43 = arith.constant 1.000000e+00 : f32
    %148 = vector.broadcast %cst_43 : f32 to vector<8x128xf32>
    %149 = arith.addf %148, %147 : vector<8x128xf32>
    %150 = arith.divf %148, %149 : vector<8x128xf32>
    %151 = vector.extract_strided_slice %150 {offsets = [0, 0], sizes = [8, 32], strides = [1, 1]} : vector<8x128xf32> to vector<8x32xf32>
    %152 = vector.extract_strided_slice %150 {offsets = [0, 32], sizes = [8, 32], strides = [1, 1]} : vector<8x128xf32> to vector<8x32xf32>
    %153 = vector.extract_strided_slice %150 {offsets = [0, 96], sizes = [8, 32], strides = [1, 1]} : vector<8x128xf32> to vector<8x32xf32>
    %154 = vector.extract_strided_slice %145 {offsets = [0, 64], sizes = [8, 32], strides = [1, 1]} : vector<8x128xf32> to vector<8x32xf32>
    %155 = math.tanh %154 : vector<8x32xf32>
    %156 = arith.mulf %151, %137 : vector<8x32xf32>
    %157 = arith.mulf %152, %155 : vector<8x32xf32>
    %158 = arith.addf %156, %157 : vector<8x32xf32>
    %159 = math.tanh %158 : vector<8x32xf32>
    %160 = arith.mulf %153, %159 : vector<8x32xf32>
    %161 = arith.maximumf %140, %160 : vector<8x32xf32>
    %c7_i32 = arith.constant 7 : i32
    %162 = arith.index_cast %c7_i32 : i32 to index
    %c0_44 = arith.constant 0 : index
    %c0_45 = arith.constant 0 : index
    %163 = vector.load %arg12[%162, %c0_44, %c0_45] : memref<8x8x128xf32, #tpu.memory_space<vmem>>, vector<1x8x128xf32>
    %164 = vector.shape_cast %163 : vector<1x8x128xf32> to vector<8x128xf32>
    %cst_46 = arith.constant dense<0.000000e+00> : vector<8x128xf32>
    %165 = tpu.matmul %160, %11, %cst_46 {dimension_numbers = #tpu.dot_dimension_numbers<[1], [0], [0], [1], [0, 0, 1, 1], [], []>} : vector<8x32xf32>, vector<32x128xf32>, vector<8x128xf32> -> vector<8x128xf32>
    %166 = arith.addf %164, %165 : vector<8x128xf32>
    %167 = arith.negf %166 : vector<8x128xf32>
    %168 = math.exp %167 : vector<8x128xf32>
    %cst_47 = arith.constant 1.000000e+00 : f32
    %169 = vector.broadcast %cst_47 : f32 to vector<8x128xf32>
    %170 = arith.addf %169, %168 : vector<8x128xf32>
    %171 = arith.divf %169, %170 : vector<8x128xf32>
    %172 = vector.extract_strided_slice %171 {offsets = [0, 0], sizes = [8, 32], strides = [1, 1]} : vector<8x128xf32> to vector<8x32xf32>
    %173 = vector.extract_strided_slice %171 {offsets = [0, 32], sizes = [8, 32], strides = [1, 1]} : vector<8x128xf32> to vector<8x32xf32>
    %174 = vector.extract_strided_slice %171 {offsets = [0, 96], sizes = [8, 32], strides = [1, 1]} : vector<8x128xf32> to vector<8x32xf32>
    %175 = vector.extract_strided_slice %166 {offsets = [0, 64], sizes = [8, 32], strides = [1, 1]} : vector<8x128xf32> to vector<8x32xf32>
    %176 = math.tanh %175 : vector<8x32xf32>
    %177 = arith.mulf %172, %158 : vector<8x32xf32>
    %178 = arith.mulf %173, %176 : vector<8x32xf32>
    %179 = arith.addf %177, %178 : vector<8x32xf32>
    %180 = math.tanh %179 : vector<8x32xf32>
    %181 = arith.mulf %174, %180 : vector<8x32xf32>
    %182 = arith.maximumf %161, %181 : vector<8x32xf32>
    %c8_i32 = arith.constant 8 : i32
    %183 = arith.truncf %182 : vector<8x32xf32> to vector<8x32xbf16>
    %c0_48 = arith.constant 0 : index
    %c0_49 = arith.constant 0 : index
    %184 = vector.load %arg7[%c0_48, %c0_49] : memref<32x128xbf16, #tpu.memory_space<vmem>>, vector<32x128xbf16>
    %cst_50 = arith.constant dense<0.000000e+00> : vector<8x128xf32>
    %185 = tpu.matmul %183, %184, %cst_50 {dimension_numbers = #tpu.dot_dimension_numbers<[1], [0], [0], [1], [0, 0, 1, 1], [], []>} : vector<8x32xbf16>, vector<32x128xbf16>, vector<8x128xf32> -> vector<8x128xf32>
    %c0_51 = arith.constant 0 : index
    %c0_52 = arith.constant 0 : index
    %186 = vector.load %arg8[%c0_51, %c0_52] : memref<1x128xf32, #tpu.memory_space<vmem>>, vector<1x128xf32>
    %187 = vector.broadcast %186 : vector<1x128xf32> to vector<8x128xf32>
    %188 = arith.addf %185, %187 : vector<8x128xf32>
    %cst_53 = arith.constant 0.000000e+00 : f32
    %189 = vector.broadcast %cst_53 : f32 to vector<8x128xf32>
    %190 = arith.maximumf %188, %189 : vector<8x128xf32>
    %191 = arith.truncf %190 : vector<8x128xf32> to vector<8x128xbf16>
    %c0_54 = arith.constant 0 : index
    %c0_55 = arith.constant 0 : index
    %192 = vector.load %arg9[%c0_54, %c0_55] : memref<128x128xbf16, #tpu.memory_space<vmem>>, vector<128x128xbf16>
    %cst_56 = arith.constant dense<0.000000e+00> : vector<8x128xf32>
    %193 = tpu.matmul %191, %192, %cst_56 {dimension_numbers = #tpu.dot_dimension_numbers<[1], [0], [0], [1], [0, 0, 1, 1], [], []>} : vector<8x128xbf16>, vector<128x128xbf16>, vector<8x128xf32> -> vector<8x128xf32>
    %c0_57 = arith.constant 0 : index
    %c0_58 = arith.constant 0 : index
    %194 = vector.load %arg10[%c0_57, %c0_58] : memref<1x128xf32, #tpu.memory_space<vmem>>, vector<1x128xf32>
    %195 = vector.broadcast %194 : vector<1x128xf32> to vector<8x128xf32>
    %196 = arith.addf %193, %195 : vector<8x128xf32>
    %197 = arith.negf %196 : vector<8x128xf32>
    %198 = math.exp %197 : vector<8x128xf32>
    %cst_59 = arith.constant 1.000000e+00 : f32
    %199 = vector.broadcast %cst_59 : f32 to vector<8x128xf32>
    %200 = arith.addf %199, %198 : vector<8x128xf32>
    %201 = arith.divf %199, %200 : vector<8x128xf32>
    %c0_60 = arith.constant 0 : index
    %c0_61 = arith.constant 0 : index
    %202 = vector.load %arg11[%c0_60, %c0_61] : memref<8x128xf32, #tpu.memory_space<vmem>>, vector<8x128xf32>
    tpu.vector_store %arg11[%c0_60, %c0_61], %201 {strides = array<i32>} : memref<8x128xf32, #tpu.memory_space<vmem>>, vector<8x128xf32>,
    return
  }
  func.func @transform_0(%arg0: i32) -> (i32, i32, i32) {
    %c0_i32 = arith.constant 0 : i32
    %c0_i32_0 = arith.constant 0 : i32
    %c0_i32_1 = arith.constant 0 : i32
    return %c0_i32, %arg0, %c0_i32_0 : i32, i32, i32
  }
  func.func @transform_1(%arg0: i32) -> (i32, i32) {
    %c0_i32 = arith.constant 0 : i32
    %c0_i32_0 = arith.constant 0 : i32
    return %arg0, %c0_i32 : i32, i32
  }
  func.func @transform_2(%arg0: i32) -> (i32, i32) {
    %c0_i32 = arith.constant 0 : i32
    %c0_i32_0 = arith.constant 0 : i32
    return %arg0, %c0_i32 : i32, i32
  }
  func.func @transform_3(%arg0: i32) -> (i32, i32) {
    %c0_i32 = arith.constant 0 : i32
    %c0_i32_0 = arith.constant 0 : i32
    %c0_i32_1 = arith.constant 0 : i32
    return %c0_i32, %c0_i32_0 : i32, i32
  }
  func.func @transform_4(%arg0: i32) -> (i32, i32) {
    %c0_i32 = arith.constant 0 : i32
    %c0_i32_0 = arith.constant 0 : i32
    %c0_i32_1 = arith.constant 0 : i32
    return %c0_i32, %c0_i32_0 : i32, i32
  }
  func.func @transform_5(%arg0: i32) -> (i32, i32) {
    %c0_i32 = arith.constant 0 : i32
    %c0_i32_0 = arith.constant 0 : i32
    %c0_i32_1 = arith.constant 0 : i32
    return %c0_i32, %c0_i32_0 : i32, i32
  }
  func.func @transform_6(%arg0: i32) -> (i32, i32) {
    %c0_i32 = arith.constant 0 : i32
    %c0_i32_0 = arith.constant 0 : i32
    %c0_i32_1 = arith.constant 0 : i32
    return %c0_i32, %c0_i32_0 : i32, i32
  }
  func.func @transform_7(%arg0: i32) -> (i32, i32) {
    %c0_i32 = arith.constant 0 : i32
    %c0_i32_0 = arith.constant 0 : i32
    %c0_i32_1 = arith.constant 0 : i32
    return %c0_i32, %c0_i32_0 : i32, i32
  }
  func.func @transform_8(%arg0: i32) -> (i32, i32) {
    %c0_i32 = arith.constant 0 : i32
    %c0_i32_0 = arith.constant 0 : i32
    %c0_i32_1 = arith.constant 0 : i32
    return %c0_i32, %c0_i32_0 : i32, i32
  }
  func.func @transform_9(%arg0: i32) -> (i32, i32) {
    %c0_i32 = arith.constant 0 : i32
    %c0_i32_0 = arith.constant 0 : i32
    %c0_i32_1 = arith.constant 0 : i32
    return %c0_i32, %c0_i32_0 : i32, i32
  }
  func.func @transform_10(%arg0: i32) -> (i32, i32) {
    %c0_i32 = arith.constant 0 : i32
    %c0_i32_0 = arith.constant 0 : i32
    return %arg0, %c0_i32 : i32, i32
  }
}

</mosaic_0001>

<llo_original>
// kernel: tpu_custom_call.1
$region0: #{tpu_custom_call.1}
  #allocation0 [shape = 'u32[]', space=smem, size = 0x4, offset = 0x4, fixed_abs, tag = 'smem constant byte address 0x4 - core index']
  #allocation1 [shape = 'u32[144,128]{1,0:T(1,128)}', space=vmem, size = 0x12000, scoped, tag = 'internal scratch']
  #allocation2 [shape = 'f32[8,8,128]{2,1,0:T(8,128)}', space=vmem, size = 0x8000, scoped, tag = 'scratch operand']
  %s0 = inlined_call_operand.hbm [shape: bf16[8,8,16], index: 0, kind: input, shape index: {}]
  %s1 = inlined_call_operand.hbm [shape: f32[8,32], index: 1, kind: input, shape index: {}]
  %s2 = inlined_call_operand.hbm [shape: f32[8,32], index: 2, kind: input, shape index: {}]
  %s3 = inlined_call_operand.hbm [shape: bf16[16,128], index: 3, kind: input, shape index: {}]
  %s4 = inlined_call_operand.vmem [shape: f32[1,128], index: 4, kind: input, shape index: {}]
  %s5 = inlined_call_operand.hbm [shape: f32[32,128], index: 5, kind: input, shape index: {}]
  %s6 = inlined_call_operand.hbm [shape: bf16[32,128], index: 6, kind: input, shape index: {}]
  %s7 = inlined_call_operand.vmem [shape: f32[1,128], index: 7, kind: input, shape index: {}]
  %s8 = inlined_call_operand.hbm [shape: bf16[128,128], index: 8, kind: input, shape index: {}]
  %s9 = inlined_call_operand.vmem [shape: f32[1,128], index: 9, kind: input, shape index: {}]
  %s10 = inlined_call_operand.hbm [shape: f32[8,128], index: 10, kind: output, shape index: {}]
  %s11 = sld [smem:[#allocation0]]
  $region78: #{tpu_custom_call.1} parent=0
    _
  %s13 = ssub.s32 1, %s11
  %s14 = scalar_select 0, %s13, %s11
  $region1: #{tpu_custom_call.1} parent=0
    #allocation3 [shape = 'u8[16384]{0}', space=vmem, size = 0x4000, scoped, tag = 'input window, operand 0, single buffered']
    #allocation4 [shape = 's32[1]{0}', space=sflag, size = 0x4, scoped, tag = 'scoped memory for tpu_custom_call.1']
    #allocation5 [shape = 's32[1]{0}', space=sflag, size = 0x4, scoped, tag = 'scoped memory for tpu_custom_call.1']
    #allocation6 [shape = 'u8[4096]{0}', space=vmem, size = 0x1000, scoped, tag = 'input window, operand 1, single buffered']
    #allocation7 [shape = 's32[1]{0}', space=sflag, size = 0x4, scoped, tag = 'scoped memory for tpu_custom_call.1']
    #allocation8 [shape = 'u8[4096]{0}', space=vmem, size = 0x1000, scoped, tag = 'input window, operand 2, single buffered']
    #allocation9 [shape = 'u8[4096]{0}', space=vmem, size = 0x1000, scoped, tag = 'input window, operand 3, single buffered']
    #allocation10 [shape = 's32[1]{0}', space=sflag, size = 0x4, scoped, tag = 'scoped memory for tpu_custom_call.1']
    #allocation11 [shape = 'u8[16384]{0}', space=vmem, size = 0x4000, scoped, tag = 'input window, operand 5, single buffered']
    #allocation12 [shape = 'u8[8192]{0}', space=vmem, size = 0x2000, scoped, tag = 'input window, operand 6, single buffered']
    #allocation13 [shape = 's32[1]{0}', space=sflag, size = 0x4, scoped, tag = 'scoped memory for tpu_custom_call.1']
    #allocation14 [shape = 'u8[32768]{0}', space=vmem, size = 0x8000, scoped, tag = 'input window, operand 8, single buffered']
    #allocation15 [shape = 'u8[4096]{0}', space=vmem, size = 0x1000, scoped, tag = 'output window, operand 0, single buffered']
    %15 = vsyncpa [#allocation4], 0
    %16 = vsyncpa [#allocation7], 0
    %17 = vsyncpa [#allocation10], 0
    %18 = vsyncpa [#allocation13], 0
    %19 = vsyncpa [#allocation5], 0
    // Predicated region
    $region2: #{tpu_custom_call.1} parent=1 // pred_check
      _
    $region3: #{tpu_custom_call.1} parent=1 // pred_check_branch
      %21 = sbr.rel (0) target = $region5
    $region4: #{tpu_custom_call.1} parent=1 // pred_region
      %s23 = ssub.s32 512, 512
      %24 = vsyncadd [#allocation4], %s23
      %s25 = sshll.u32 [#allocation3], 4
      %s26 = int_to_ptr.vmem [resolvable:$true] %s25
      %31 = dma.hbm_to_vmem [thread:$0]  %s0, 512, %s26, [#allocation4], 64, 64, 4
    $region5: #{tpu_custom_call.1} parent=1 // pred_fallthru
      _
    // Predicated region
    $region6: #{tpu_custom_call.1} parent=1 // pred_check
      _
    $region7: #{tpu_custom_call.1} parent=1 // pred_check_branch
      %33 = sbr.rel (0) target = $region9
    $region8: #{tpu_custom_call.1} parent=1 // pred_region
      %s35 = ssub.s32 128, 128
      %36 = vsyncadd [#allocation7], %s35
      %s38 = sshll.u32 [#allocation6], 4
      %s39 = int_to_ptr.vmem [resolvable:$true] %s38
      %41 = dma.hbm_to_vmem [thread:$0]  %s1, 128, %s39, [#allocation7]
    $region9: #{tpu_custom_call.1} parent=1 // pred_fallthru
      _
    // Predicated region
    $region10: #{tpu_custom_call.1} parent=1 // pred_check
      _
    $region11: #{tpu_custom_call.1} parent=1 // pred_check_branch
      %43 = sbr.rel (0) target = $region13
    $region12: #{tpu_custom_call.1} parent=1 // pred_region
      %s45 = ssub.s32 128, 128
      %46 = vsyncadd [#allocation7], %s45
      %s48 = sshll.u32 [#allocation8], 4
      %s49 = int_to_ptr.vmem [resolvable:$true] %s48
      %51 = dma.hbm_to_vmem [thread:$0]  %s2, 128, %s49, [#allocation7]
    $region13: #{tpu_custom_call.1} parent=1 // pred_fallthru
      _
    // Predicated region
    $region14: #{tpu_custom_call.1} parent=1 // pred_check
      _
    $region15: #{tpu_custom_call.1} parent=1 // pred_check_branch
      %53 = sbr.rel (0) target = $region17
    $region16: #{tpu_custom_call.1} parent=1 // pred_region
      %s55 = ssub.s32 128, 128
      %56 = vsyncadd [#allocation10], %s55
      %s57 = sshll.u32 [#allocation9], 4
      %s58 = int_to_ptr.vmem [resolvable:$true] %s57
      %63 = dma.hbm_to_vmem [thread:$0]  %s3, 128, %s58, [#allocation10], 64, 64, 4
    $region17: #{tpu_custom_call.1} parent=1 // pred_fallthru
      _
    // Predicated region
    $region18: #{tpu_custom_call.1} parent=1 // pred_check
      _
    $region19: #{tpu_custom_call.1} parent=1 // pred_check_branch
      %65 = sbr.rel (0) target = $region21
    $region20: #{tpu_custom_call.1} parent=1 // pred_region
      _
    $region21: #{tpu_custom_call.1} parent=1 // pred_fallthru
      _
    // Predicated region
    $region22: #{tpu_custom_call.1} parent=1 // pred_check
      _
    $region23: #{tpu_custom_call.1} parent=1 // pred_check_branch
      %67 = sbr.rel (0) target = $region25
    $region24: #{tpu_custom_call.1} parent=1 // pred_region
      %s69 = ssub.s32 512, 512
      %70 = vsyncadd [#allocation10], %s69
      %s71 = sshll.u32 [#allocation11], 4
      %s72 = int_to_ptr.vmem [resolvable:$true] %s71
      %77 = dma.hbm_to_vmem [thread:$0]  %s5, 512, %s72, [#allocation10], 128, 128, 8
    $region25: #{tpu_custom_call.1} parent=1 // pred_fallthru
      _
    // Predicated region
    $region26: #{tpu_custom_call.1} parent=1 // pred_check
      _
    $region27: #{tpu_custom_call.1} parent=1 // pred_check_branch
      %79 = sbr.rel (0) target = $region29
    $region28: #{tpu_custom_call.1} parent=1 // pred_region
      %s81 = ssub.s32 256, 256
      %82 = vsyncadd [#allocation13], %s81
      %s83 = sshll.u32 [#allocation12], 4
      %s84 = int_to_ptr.vmem [resolvable:$true] %s83
      %89 = dma.hbm_to_vmem [thread:$0]  %s6, 256, %s84, [#allocation13], 64, 64, 4
    $region29: #{tpu_custom_call.1} parent=1 // pred_fallthru
      _
    // Predicated region
    $region30: #{tpu_custom_call.1} parent=1 // pred_check
      _
    $region31: #{tpu_custom_call.1} parent=1 // pred_check_branch
      %91 = sbr.rel (0) target = $region33
    $region32: #{tpu_custom_call.1} parent=1 // pred_region
      _
    $region33: #{tpu_custom_call.1} parent=1 // pred_fallthru
      _
    // Predicated region
    $region34: #{tpu_custom_call.1} parent=1 // pred_check
      _
    $region35: #{tpu_custom_call.1} parent=1 // pred_check_branch
      %93 = sbr.rel (0) target = $region37
    $region36: #{tpu_custom_call.1} parent=1 // pred_region
      %s95 = ssub.s32 1024, 1024
      %96 = vsyncadd [#allocation13], %s95
      %s97 = sshll.u32 [#allocation14], 4
      %s98 = int_to_ptr.vmem [resolvable:$true] %s97
      %103 = dma.hbm_to_vmem [thread:$0]  %s8, 1024, %s98, [#allocation13], 64, 64, 4
    $region37: #{tpu_custom_call.1} parent=1 // pred_fallthru
      _
    // Predicated region
    $region38: #{tpu_custom_call.1} parent=1 // pred_check
      _
    $region39: #{tpu_custom_call.1} parent=1 // pred_check_branch
      %105 = sbr.rel (0) target = $region41
    $region40: #{tpu_custom_call.1} parent=1 // pred_region
      _
    $region41: #{tpu_custom_call.1} parent=1 // pred_fallthru
      _
    // Predicated region
    $region42: #{tpu_custom_call.1} parent=1 // pred_check
      _
    $region43: #{tpu_custom_call.1} parent=1 // pred_check_branch
      %107 = sbr.rel (0) target = $region45
    $region44: #{tpu_custom_call.1} parent=1 // pred_region
      %108 = dma.done [#allocation4], 512
    $region45: #{tpu_custom_call.1} parent=1 // pred_fallthru
      _
    // Predicated region
    $region46: #{tpu_custom_call.1} parent=1 // pred_check
      _
    $region47: #{tpu_custom_call.1} parent=1 // pred_check_branch
      %110 = sbr.rel (0) target = $region49
    $region48: #{tpu_custom_call.1} parent=1 // pred_region
      %111 = dma.done [#allocation7], 128
    $region49: #{tpu_custom_call.1} parent=1 // pred_fallthru
      _
    // Predicated region
    $region50: #{tpu_custom_call.1} parent=1 // pred_check
      _
    $region51: #{tpu_custom_call.1} parent=1 // pred_check_branch
      %113 = sbr.rel (0) target = $region53
    $region52: #{tpu_custom_call.1} parent=1 // pred_region
      %114 = dma.done [#allocation7], 128
    $region53: #{tpu_custom_call.1} parent=1 // pred_fallthru
      _
    // Predicated region
    $region54: #{tpu_custom_call.1} parent=1 // pred_check
      _
    $region55: #{tpu_custom_call.1} parent=1 // pred_check_branch
      %116 = sbr.rel (0) target = $region57
    $region56: #{tpu_custom_call.1} parent=1 // pred_region
      %117 = dma.done [#allocation10], 128
    $region57: #{tpu_custom_call.1} parent=1 // pred_fallthru
      _
    // Predicated region
    $region58: #{tpu_custom_call.1} parent=1 // pred_check
      _
    $region59: #{tpu_custom_call.1} parent=1 // pred_check_branch
      %119 = sbr.rel (0) target = $region61
    $region60: #{tpu_custom_call.1} parent=1 // pred_region
      %120 = dma.done [#allocation10], 512
    $region61: #{tpu_custom_call.1} parent=1 // pred_fallthru
      _
    // Predicated region
    $region62: #{tpu_custom_call.1} parent=1 // pred_check
      _
    $region63: #{tpu_custom_call.1} parent=1 // pred_check_branch
      %122 = sbr.rel (0) target = $region65
    $region64: #{tpu_custom_call.1} parent=1 // pred_region
      %123 = dma.done [#allocation13], 256
    $region65: #{tpu_custom_call.1} parent=1 // pred_fallthru
      _
    // Predicated region
    $region66: #{tpu_custom_call.1} parent=1 // pred_check
      _
    $region67: #{tpu_custom_call.1} parent=1 // pred_check_branch
      %125 = sbr.rel (0) target = $region69
    $region68: #{tpu_custom_call.1} parent=1 // pred_region
      %126 = dma.done [#allocation13], 1024
    $region69: #{tpu_custom_call.1} parent=1 // pred_fallthru
      _
    %v128 = vld [vmem:[#allocation3] sm:$0xf]
    %v129 = vld [vmem:[#allocation3 + $0x4] sm:$0xf]
    %v130 = vld [vmem:[#allocation3 + $0x8] sm:$0xf]
    %v131 = vld [vmem:[#allocation3 + $0xc] sm:$0xf]
    %v132 = vld [vmem:[#allocation3 + $0x10] sm:$0xf]
    %v133 = vld [vmem:[#allocation3 + $0x14] sm:$0xf]
    %v134 = vld [vmem:[#allocation3 + $0x18] sm:$0xf]
    %v135 = vld [vmem:[#allocation3 + $0x1c] sm:$0xf]
    %v136 = vunpack.c.l.bf16 %v128
    %v137 = vunpack.c.l.bf16 %v129
    %v138 = vunpack.c.l.bf16 %v130
    %v139 = vunpack.c.l.bf16 %v131
    %v140 = vunpack.c.l.bf16 %v132
    %v141 = vunpack.c.l.bf16 %v133
    %v142 = vunpack.c.l.bf16 %v134
    %v143 = vunpack.c.l.bf16 %v135
    %v144 = vpack.c.bf16 %v137, %v136
    %v145 = vpack.c.bf16 %v139, %v138
    %v146 = vpack.c.bf16 %v141, %v140
    %v147 = vpack.c.bf16 %v143, %v142
    %v148 = vld [vmem:[#allocation9] sm:$0xf]
    %v149 = vld [vmem:[#allocation9 + $0x4] sm:$0xf]
    %v150 = vld [vmem:[%s4] sm:$0x1]
    %v152 = vlaneseq
    %v153 = vshrl.u32 %v152, 7
    %v154 = vsub.s32 0, %v153
    %v155 = vrot.slane %v150, %v154
    %v159 = vunpack.c.l.b16 %v148
    %v160 = vunpack.c.l.b16 %v149
    %v161 = vpack.c.b16 %v160, %v159
    %vm163 = vcmask 130048
    %v165 = vsel %vm163, %v144, 0
    %v168 = vsel %vm163, %v145, 0
    %v171 = vsel %vm163, %v146, 0
    %v174 = vsel %vm163, %v147, 0
    %176 = vmatprep.subr.bf16.mxu0 0
    %177 = vmatpush1.bf16.msra.mxu0 0
    %178 = vmatprep.subr.bf16.mxu0 0
    %179 = vmatpush1.bf16.msra.mxu0 0
    %180 = vmatprep.subr.bf16.mxu0 0
    %181 = vmatpush1.bf16.msra.mxu0 0
    %182 = vmatprep.subr.bf16.mxu0 0
    %183 = vmatpush1.bf16.msra.mxu0 0
    %184 = vmatprep.subr.bf16.mxu0 0
    %185 = vmatpush1.bf16.msra.mxu0 0
    %186 = vmatprep.subr.bf16.mxu0 0
    %187 = vmatpush1.bf16.msra.mxu0 0
    %188 = vmatprep.subr.bf16.mxu0 0
    %189 = vmatpush1.bf16.msra.mxu0 0
    %190 = vmatprep.subr.bf16.mxu0 0
    %191 = vmatpush1.bf16.msra.mxu0 %v161
    %192 = vmatprep.subr.bf16.mxu0 0
    %193 = vmatpush2.bf16.msra.mxu0 0
    %194 = vmatprep.subr.bf16.mxu0 0
    %195 = vmatpush2.bf16.msra.mxu0 0
    %196 = vmatprep.subr.bf16.mxu0 0
    %197 = vmatpush2.bf16.msra.mxu0 0
    %198 = vmatprep.subr.bf16.mxu0 0
    %199 = vmatpush2.bf16.msra.mxu0 0
    %200 = vmatprep.subr.bf16.mxu0 0
    %201 = vmatpush2.bf16.msra.mxu0 0
    %202 = vmatprep.subr.bf16.mxu0 0
    %203 = vmatpush2.bf16.msra.mxu0 0
    %204 = vmatprep.subr.bf16.mxu0 0
    %205 = vmatpush2.bf16.msra.mxu0 0
    %206 = vmatprep.subr.bf16.mxu0 0
    %207 = vmatpush2.bf16.msra.mxu0 0
    %208 = vmatprep.mubr.bf16.mxu0 0
    %209 = vmatmul.mubr.bf16.gmra.mxu0 %v165
    %v210 = vpop.f32.mrf.mxu0
    %v211 = vadd.f32 %v155, %v210
    %v212 = vpop.f32.mrf.mxu0
    %v213 = vpop.f32.mrf.mxu0
    %v214 = vadd.f32 %v155, %v213
    %v215 = vpop.f32.mrf.mxu0
    %216 = vmatprep.mubr.bf16.mxu0 0
    %217 = vmatmul.mubr.bf16.gmra.mxu0 %v168
    %v218 = vpop.f32.mrf.mxu0
    %v219 = vadd.f32 %v155, %v218
    %v220 = vpop.f32.mrf.mxu0
    %v221 = vpop.f32.mrf.mxu0
    %v222 = vadd.f32 %v155, %v221
    %v223 = vpop.f32.mrf.mxu0
    %224 = vmatprep.mubr.bf16.mxu0 0
    %225 = vmatmul.mubr.bf16.gmra.mxu0 %v171
    %v226 = vpop.f32.mrf.mxu0
    %v227 = vadd.f32 %v155, %v226
    %v228 = vpop.f32.mrf.mxu0
    %v229 = vpop.f32.mrf.mxu0
    %v230 = vadd.f32 %v155, %v229
    %v231 = vpop.f32.mrf.mxu0
    %232 = vmatprep.mubr.bf16.mxu0 0
    %233 = vmatmul.mubr.bf16.gmra.mxu0 %v174
    %v234 = vpop.f32.mrf.mxu0
    %v235 = vadd.f32 %v155, %v234
    %v236 = vpop.f32.mrf.mxu0
    %v237 = vpop.f32.mrf.mxu0
    %v238 = vadd.f32 %v155, %v237
    %v239 = vpop.f32.mrf.mxu0
    %240 = vdwg.mxu0
    %241 = vst [vmem:[#allocation2] sm:$0xff] %v211
    %242 = vst [vmem:[#allocation2 + $0x8] sm:$0xff] %v214
    %243 = vst [vmem:[#allocation2 + $0x10] sm:$0xff] %v219
    %244 = vst [vmem:[#allocation2 + $0x18] sm:$0xff] %v222
    %245 = vst [vmem:[#allocation2 + $0x20] sm:$0xff] %v227
    %246 = vst [vmem:[#allocation2 + $0x28] sm:$0xff] %v230
    %247 = vst [vmem:[#allocation2 + $0x30] sm:$0xff] %v235
    %248 = vst [vmem:[#allocation2 + $0x38] sm:$0xff] %v238
    %v249 = vld [vmem:[#allocation11] sm:$0xff]
    %v250 = vld [vmem:[#allocation11 + $0x8] sm:$0xff]
    %v251 = vld [vmem:[#allocation11 + $0x10] sm:$0xff]
    %v252 = vld [vmem:[#allocation11 + $0x18] sm:$0xff]
    %v253 = vld [vmem:[#allocation6] sm:$0xff]
    %v254 = vld [vmem:[#allocation8] sm:$0xff]
    %v255 = vld [vmem:[#allocation2] sm:$0xff]
    %vm256 = vcmask 261120
    %v258 = vsel %vm256, %v253, 0
    %260 = vmatprep.subr.mxu0 0.0
    %261 = vmatpush1.msra.mxu0 0.0
    %262 = vmatprep.subr.mxu0 0.0
    %263 = vmatpush1.msra.mxu0 0.0
    %264 = vmatprep.subr.mxu0 0.0
    %265 = vmatpush1.msra.mxu0 0.0
    %266 = vmatprep.subr.mxu0 0.0
    %267 = vmatpush1.msra.mxu0 0.0
    %268 = vmatprep.subr.mxu0 0.0
    %269 = vmatpush1.msra.mxu0 0.0
    %270 = vmatprep.subr.mxu0 0.0
    %271 = vmatpush1.msra.mxu0 0.0
    %272 = vmatprep.subr.mxu0 0.0
    %273 = vmatpush1.msra.mxu0 0.0
    %274 = vmatprep.subr.mxu0 0.0
    %275 = vmatpush1.msra.mxu0 0.0
    %276 = vmatprep.subr.mxu0 0.0
    %277 = vmatpush1.msra.mxu0 0.0
    %278 = vmatprep.subr.mxu0 0.0
    %279 = vmatpush1.msra.mxu0 0.0
    %280 = vmatprep.subr.mxu0 0.0
    %281 = vmatpush1.msra.mxu0 0.0
    %282 = vmatprep.subr.mxu0 0.0
    %283 = vmatpush1.msra.mxu0 0.0
    %284 = vmatprep.subr.mxu0 0.0
    %285 = vmatpush1.msra.mxu0 %v252
    %286 = vmatprep.subr.mxu0 0.0
    %287 = vmatpush1.msra.mxu0 %v251
    %288 = vmatprep.subr.mxu0 0.0
    %289 = vmatpush1.msra.mxu0 %v250
    %290 = vmatprep.subr.mxu0 0.0
    %291 = vmatpush1.msra.mxu0 %v249
    %292 = vmatprep.subr.mxu0 0.0
    %293 = vmatpush2.msra.mxu0 0.0
    %294 = vmatprep.subr.mxu0 0.0
    %295 = vmatpush2.msra.mxu0 0.0
    %296 = vmatprep.subr.mxu0 0.0
    %297 = vmatpush2.msra.mxu0 0.0
    %298 = vmatprep.subr.mxu0 0.0
    %299 = vmatpush2.msra.mxu0 0.0
    %300 = vmatprep.subr.mxu0 0.0
    %301 = vmatpush2.msra.mxu0 0.0
    %302 = vmatprep.subr.mxu0 0.0
    %303 = vmatpush2.msra.mxu0 0.0
    %304 = vmatprep.subr.mxu0 0.0
    %305 = vmatpush2.msra.mxu0 0.0
    %306 = vmatprep.subr.mxu0 0.0
    %307 = vmatpush2.msra.mxu0 0.0
    %308 = vmatprep.subr.mxu0 0.0
    %309 = vmatpush2.msra.mxu0 0.0
    %310 = vmatprep.subr.mxu0 0.0
    %311 = vmatpush2.msra.mxu0 0.0
    %312 = vmatprep.subr.mxu0 0.0
    %313 = vmatpush2.msra.mxu0 0.0
    %314 = vmatprep.subr.mxu0 0.0
    %315 = vmatpush2.msra.mxu0 0.0
    %316 = vmatprep.subr.mxu0 0.0
    %317 = vmatpush2.msra.mxu0 0.0
    %318 = vmatprep.subr.mxu0 0.0
    %319 = vmatpush2.msra.mxu0 0.0
    %320 = vmatprep.subr.mxu0 0.0
    %321 = vmatpush2.msra.mxu0 0.0
    %322 = vmatprep.subr.mxu0 0.0
    %323 = vmatpush2.msra.mxu0 0.0
    %324 = vmatprep.mubr.f32.mxu0 0.0
    %325 = vmatmul.mubr.f32.gmra.mxu0 %v258
    %v326 = vpop.f32.mrf.mxu0
    %v327 = vadd.f32 0.0, %v326
    %v328 = vpop.f32.mrf.mxu0
    %329 = vdwg.mxu0
    %v330 = vadd.f32 %v255, %v327
    %v331 = vxor.u32 %v330, 2147483648
    %v332 = vmul.f32 %v331, 1.442695
    %v333 = vpow.pop %v332
    %v334 = vadd.f32 %v333, 1.0
    %v335 = vrcp.pop %v334
    %v336 = vmul.f32 1.0, %v335
    %v337 = vtanh.pop %v330
    %v338 = vmul.f32 %v336, %v254
    %340 = vrot.lane.b32.xlu0 %v337, 96
    %v341 = vpop.permute.xlu0 %340
    %v343 = vmul.f32 %v336, %v341
    %345 = vrot.lane.b32.xlu0 %v343, 96
    %v346 = vpop.permute.xlu0 %345
    %v348 = vadd.f32 %v338, %v346
    %v349 = vtanh.pop %v348
    %351 = vrot.lane.b32.xlu0 %v349, 96
    %v352 = vpop.permute.xlu0 %351
    %v354 = vmul.f32 %v336, %v352
    %s355 = scalar_lea.vmem [#allocation2], 8
    %v356 = vld [vmem:[%s355] sm:$0xff]
    %358 = vrot.lane.b32.xlu0 %v354, 32
    %v359 = vpop.permute.xlu0 %358
    %v360 = vsel %vm256, %v359, 0
    %362 = vmatprep.subr.mxu0 0.0
    %363 = vmatpush1.msra.mxu0 0.0
    %364 = vmatprep.subr.mxu0 0.0
    %365 = vmatpush1.msra.mxu0 0.0
    %366 = vmatprep.subr.mxu0 0.0
    %367 = vmatpush1.msra.mxu0 0.0
    %368 = vmatprep.subr.mxu0 0.0
    %369 = vmatpush1.msra.mxu0 0.0
    %370 = vmatprep.subr.mxu0 0.0
    %371 = vmatpush1.msra.mxu0 0.0
    %372 = vmatprep.subr.mxu0 0.0
    %373 = vmatpush1.msra.mxu0 0.0
    %374 = vmatprep.subr.mxu0 0.0
    %375 = vmatpush1.msra.mxu0 0.0
    %376 = vmatprep.subr.mxu0 0.0
    %377 = vmatpush1.msra.mxu0 0.0
    %378 = vmatprep.subr.mxu0 0.0
    %379 = vmatpush1.msra.mxu0 0.0
    %380 = vmatprep.subr.mxu0 0.0
    %381 = vmatpush1.msra.mxu0 0.0
    %382 = vmatprep.subr.mxu0 0.0
    %383 = vmatpush1.msra.mxu0 0.0
    %384 = vmatprep.subr.mxu0 0.0
    %385 = vmatpush1.msra.mxu0 0.0
    %386 = vmatprep.subr.mxu0 0.0
    %387 = vmatpush1.msra.mxu0 %v252
    %388 = vmatprep.subr.mxu0 0.0
    %389 = vmatpush1.msra.mxu0 %v251
    %390 = vmatprep.subr.mxu0 0.0
    %391 = vmatpush1.msra.mxu0 %v250
    %392 = vmatprep.subr.mxu0 0.0
    %393 = vmatpush1.msra.mxu0 %v249
    %394 = vmatprep.subr.mxu0 0.0
    %395 = vmatpush2.msra.mxu0 0.0
    %396 = vmatprep.subr.mxu0 0.0
    %397 = vmatpush2.msra.mxu0 0.0
    %398 = vmatprep.subr.mxu0 0.0
    %399 = vmatpush2.msra.mxu0 0.0
    %400 = vmatprep.subr.mxu0 0.0
    %401 = vmatpush2.msra.mxu0 0.0
    %402 = vmatprep.subr.mxu0 0.0
    %403 = vmatpush2.msra.mxu0 0.0
    %404 = vmatprep.subr.mxu0 0.0
    %405 = vmatpush2.msra.mxu0 0.0
    %406 = vmatprep.subr.mxu0 0.0
    %407 = vmatpush2.msra.mxu0 0.0
    %408 = vmatprep.subr.mxu0 0.0
    %409 = vmatpush2.msra.mxu0 0.0
    %410 = vmatprep.subr.mxu0 0.0
    %411 = vmatpush2.msra.mxu0 0.0
    %412 = vmatprep.subr.mxu0 0.0
    %413 = vmatpush2.msra.mxu0 0.0
    %414 = vmatprep.subr.mxu0 0.0
    %415 = vmatpush2.msra.mxu0 0.0
    %416 = vmatprep.subr.mxu0 0.0
    %417 = vmatpush2.msra.mxu0 0.0
    %418 = vmatprep.subr.mxu0 0.0
    %419 = vmatpush2.msra.mxu0 0.0
    %420 = vmatprep.subr.mxu0 0.0
    %421 = vmatpush2.msra.mxu0 0.0
    %422 = vmatprep.subr.mxu0 0.0
    %423 = vmatpush2.msra.mxu0 0.0
    %424 = vmatprep.subr.mxu0 0.0
    %425 = vmatpush2.msra.mxu0 0.0
    %426 = vmatprep.mubr.f32.mxu0 0.0
    %427 = vmatmul.mubr.f32.gmra.mxu0 %v360
    %v428 = vpop.f32.mrf.mxu0
    %v429 = vadd.f32 0.0, %v428
    %v430 = vpop.f32.mrf.mxu0
    %431 = vdwg.mxu0
    %v432 = vadd.f32 %v356, %v429
    %v433 = vxor.u32 %v432, 2147483648
    %v434 = vmul.f32 %v433, 1.442695
    %v435 = vpow.pop %v434
    %v436 = vadd.f32 %v435, 1.0
    %v437 = vrcp.pop %v436
    %v438 = vmul.f32 1.0, %v437
    %v439 = vtanh.pop %v432
    %v440 = vmul.f32 %v438, %v348
    %442 = vrot.lane.b32.xlu0 %v439, 96
    %v443 = vpop.permute.xlu0 %442
    %v445 = vmul.f32 %v438, %v443
    %447 = vrot.lane.b32.xlu0 %v445, 96
    %v448 = vpop.permute.xlu0 %447
    %v450 = vadd.f32 %v440, %v448
    %v451 = vtanh.pop %v450
    %453 = vrot.lane.b32.xlu0 %v451, 96
    %v454 = vpop.permute.xlu0 %453
    %v456 = vmul.f32 %v438, %v454
    %v457 = vmax.f32 %v354, %v456
    %s458 = scalar_lea.vmem [#allocation2], 16
    %v459 = vld [vmem:[%s458] sm:$0xff]
    %461 = vrot.lane.b32.xlu0 %v456, 32
    %v462 = vpop.permute.xlu0 %461
    %v463 = vsel %vm256, %v462, 0
    %465 = vmatprep.subr.mxu0 0.0
    %466 = vmatpush1.msra.mxu0 0.0
    %467 = vmatprep.subr.mxu0 0.0
    %468 = vmatpush1.msra.mxu0 0.0
    %469 = vmatprep.subr.mxu0 0.0
    %470 = vmatpush1.msra.mxu0 0.0
    %471 = vmatprep.subr.mxu0 0.0
    %472 = vmatpush1.msra.mxu0 0.0
    %473 = vmatprep.subr.mxu0 0.0
    %474 = vmatpush1.msra.mxu0 0.0
    %475 = vmatprep.subr.mxu0 0.0
    %476 = vmatpush1.msra.mxu0 0.0
    %477 = vmatprep.subr.mxu0 0.0
    %478 = vmatpush1.msra.mxu0 0.0
    %479 = vmatprep.subr.mxu0 0.0
    %480 = vmatpush1.msra.mxu0 0.0
    %481 = vmatprep.subr.mxu0 0.0
    %482 = vmatpush1.msra.mxu0 0.0
    %483 = vmatprep.subr.mxu0 0.0
    %484 = vmatpush1.msra.mxu0 0.0
    %485 = vmatprep.subr.mxu0 0.0
    %486 = vmatpush1.msra.mxu0 0.0
    %487 = vmatprep.subr.mxu0 0.0
    %488 = vmatpush1.msra.mxu0 0.0
    %489 = vmatprep.subr.mxu0 0.0
    %490 = vmatpush1.msra.mxu0 %v252
    %491 = vmatprep.subr.mxu0 0.0
    %492 = vmatpush1.msra.mxu0 %v251
    %493 = vmatprep.subr.mxu0 0.0
    %494 = vmatpush1.msra.mxu0 %v250
    %495 = vmatprep.subr.mxu0 0.0
    %496 = vmatpush1.msra.mxu0 %v249
    %497 = vmatprep.subr.mxu0 0.0
    %498 = vmatpush2.msra.mxu0 0.0
    %499 = vmatprep.subr.mxu0 0.0
    %500 = vmatpush2.msra.mxu0 0.0
    %501 = vmatprep.subr.mxu0 0.0
    %502 = vmatpush2.msra.mxu0 0.0
    %503 = vmatprep.subr.mxu0 0.0
    %504 = vmatpush2.msra.mxu0 0.0
    %505 = vmatprep.subr.mxu0 0.0
    %506 = vmatpush2.msra.mxu0 0.0
    %507 = vmatprep.subr.mxu0 0.0
    %508 = vmatpush2.msra.mxu0 0.0
    %509 = vmatprep.subr.mxu0 0.0
    %510 = vmatpush2.msra.mxu0 0.0
    %511 = vmatprep.subr.mxu0 0.0
    %512 = vmatpush2.msra.mxu0 0.0
    %513 = vmatprep.subr.mxu0 0.0
    %514 = vmatpush2.msra.mxu0 0.0
    %515 = vmatprep.subr.mxu0 0.0
    %516 = vmatpush2.msra.mxu0 0.0
    %517 = vmatprep.subr.mxu0 0.0
    %518 = vmatpush2.msra.mxu0 0.0
    %519 = vmatprep.subr.mxu0 0.0
    %520 = vmatpush2.msra.mxu0 0.0
    %521 = vmatprep.subr.mxu0 0.0
    %522 = vmatpush2.msra.mxu0 0.0
    %523 = vmatprep.subr.mxu0 0.0
    %524 = vmatpush2.msra.mxu0 0.0
    %525 = vmatprep.subr.mxu0 0.0
    %526 = vmatpush2.msra.mxu0 0.0
    %527 = vmatprep.subr.mxu0 0.0
    %528 = vmatpush2.msra.mxu0 0.0
    %529 = vmatprep.mubr.f32.mxu0 0.0
    %530 = vmatmul.mubr.f32.gmra.mxu0 %v463
    %v531 = vpop.f32.mrf.mxu0
    %v532 = vadd.f32 0.0, %v531
    %v533 = vpop.f32.mrf.mxu0
    %534 = vdwg.mxu0
    %v535 = vadd.f32 %v459, %v532
    %v536 = vxor.u32 %v535, 2147483648
    %v537 = vmul.f32 %v536, 1.442695
    %v538 = vpow.pop %v537
    %v539 = vadd.f32 %v538, 1.0
    %v540 = vrcp.pop %v539
    %v541 = vmul.f32 1.0, %v540
    %v542 = vtanh.pop %v535
    %v543 = vmul.f32 %v541, %v450
    %545 = vrot.lane.b32.xlu0 %v542, 96
    %v546 = vpop.permute.xlu0 %545
    %v548 = vmul.f32 %v541, %v546
    %550 = vrot.lane.b32.xlu0 %v548, 96
    %v551 = vpop.permute.xlu0 %550
    %v553 = vadd.f32 %v543, %v551
    %v554 = vtanh.pop %v553
    %556 = vrot.lane.b32.xlu0 %v554, 96
    %v557 = vpop.permute.xlu0 %556
    %v559 = vmul.f32 %v541, %v557
    %v560 = vmax.f32 %v457, %v559
    %s561 = scalar_lea.vmem [#allocation2], 24
    %v562 = vld [vmem:[%s561] sm:$0xff]
    %564 = vrot.lane.b32.xlu0 %v559, 32
    %v565 = vpop.permute.xlu0 %564
    %v566 = vsel %vm256, %v565, 0
    %568 = vmatprep.subr.mxu0 0.0
    %569 = vmatpush1.msra.mxu0 0.0
    %570 = vmatprep.subr.mxu0 0.0
    %571 = vmatpush1.msra.mxu0 0.0
    %572 = vmatprep.subr.mxu0 0.0
    %573 = vmatpush1.msra.mxu0 0.0
    %574 = vmatprep.subr.mxu0 0.0
    %575 = vmatpush1.msra.mxu0 0.0
    %576 = vmatprep.subr.mxu0 0.0
    %577 = vmatpush1.msra.mxu0 0.0
    %578 = vmatprep.subr.mxu0 0.0
    %579 = vmatpush1.msra.mxu0 0.0
    %580 = vmatprep.subr.mxu0 0.0
    %581 = vmatpush1.msra.mxu0 0.0
    %582 = vmatprep.subr.mxu0 0.0
    %583 = vmatpush1.msra.mxu0 0.0
    %584 = vmatprep.subr.mxu0 0.0
    %585 = vmatpush1.msra.mxu0 0.0
    %586 = vmatprep.subr.mxu0 0.0
    %587 = vmatpush1.msra.mxu0 0.0
    %588 = vmatprep.subr.mxu0 0.0
    %589 = vmatpush1.msra.mxu0 0.0
    %590 = vmatprep.subr.mxu0 0.0
    %591 = vmatpush1.msra.mxu0 0.0
    %592 = vmatprep.subr.mxu0 0.0
    %593 = vmatpush1.msra.mxu0 %v252
    %594 = vmatprep.subr.mxu0 0.0
    %595 = vmatpush1.msra.mxu0 %v251
    %596 = vmatprep.subr.mxu0 0.0
    %597 = vmatpush1.msra.mxu0 %v250
    %598 = vmatprep.subr.mxu0 0.0
    %599 = vmatpush1.msra.mxu0 %v249
    %600 = vmatprep.subr.mxu0 0.0
    %601 = vmatpush2.msra.mxu0 0.0
    %602 = vmatprep.subr.mxu0 0.0
    %603 = vmatpush2.msra.mxu0 0.0
    %604 = vmatprep.subr.mxu0 0.0
    %605 = vmatpush2.msra.mxu0 0.0
    %606 = vmatprep.subr.mxu0 0.0
    %607 = vmatpush2.msra.mxu0 0.0
    %608 = vmatprep.subr.mxu0 0.0
    %609 = vmatpush2.msra.mxu0 0.0
    %610 = vmatprep.subr.mxu0 0.0
    %611 = vmatpush2.msra.mxu0 0.0
    %612 = vmatprep.subr.mxu0 0.0
    %613 = vmatpush2.msra.mxu0 0.0
    %614 = vmatprep.subr.mxu0 0.0
    %615 = vmatpush2.msra.mxu0 0.0
    %616 = vmatprep.subr.mxu0 0.0
    %617 = vmatpush2.msra.mxu0 0.0
    %618 = vmatprep.subr.mxu0 0.0
    %619 = vmatpush2.msra.mxu0 0.0
    %620 = vmatprep.subr.mxu0 0.0
    %621 = vmatpush2.msra.mxu0 0.0
    %622 = vmatprep.subr.mxu0 0.0
    %623 = vmatpush2.msra.mxu0 0.0
    %624 = vmatprep.subr.mxu0 0.0
    %625 = vmatpush2.msra.mxu0 0.0
    %626 = vmatprep.subr.mxu0 0.0
    %627 = vmatpush2.msra.mxu0 0.0
    %628 = vmatprep.subr.mxu0 0.0
    %629 = vmatpush2.msra.mxu0 0.0
    %630 = vmatprep.subr.mxu0 0.0
    %631 = vmatpush2.msra.mxu0 0.0
    %632 = vmatprep.mubr.f32.mxu0 0.0
    %633 = vmatmul.mubr.f32.gmra.mxu0 %v566
    %v634 = vpop.f32.mrf.mxu0
    %v635 = vadd.f32 0.0, %v634
    %v636 = vpop.f32.mrf.mxu0
    %637 = vdwg.mxu0
    %v638 = vadd.f32 %v562, %v635
    %v639 = vxor.u32 %v638, 2147483648
    %v640 = vmul.f32 %v639, 1.442695
    %v641 = vpow.pop %v640
    %v642 = vadd.f32 %v641, 1.0
    %v643 = vrcp.pop %v642
    %v644 = vmul.f32 1.0, %v643
    %v645 = vtanh.pop %v638
    %v646 = vmul.f32 %v644, %v553
    %648 = vrot.lane.b32.xlu0 %v645, 96
    %v649 = vpop.permute.xlu0 %648
    %v651 = vmul.f32 %v644, %v649
    %653 = vrot.lane.b32.xlu0 %v651, 96
    %v654 = vpop.permute.xlu0 %653
    %v656 = vadd.f32 %v646, %v654
    %v657 = vtanh.pop %v656
    %659 = vrot.lane.b32.xlu0 %v657, 96
    %v660 = vpop.permute.xlu0 %659
    %v662 = vmul.f32 %v644, %v660
    %v663 = vmax.f32 %v560, %v662
    %s664 = scalar_lea.vmem [#allocation2], 32
    %v665 = vld [vmem:[%s664] sm:$0xff]
    %667 = vrot.lane.b32.xlu0 %v662, 32
    %v668 = vpop.permute.xlu0 %667
    %v669 = vsel %vm256, %v668, 0
    %671 = vmatprep.subr.mxu0 0.0
    %672 = vmatpush1.msra.mxu0 0.0
    %673 = vmatprep.subr.mxu0 0.0
    %674 = vmatpush1.msra.mxu0 0.0
    %675 = vmatprep.subr.mxu0 0.0
    %676 = vmatpush1.msra.mxu0 0.0
    %677 = vmatprep.subr.mxu0 0.0
    %678 = vmatpush1.msra.mxu0 0.0
    %679 = vmatprep.subr.mxu0 0.0
    %680 = vmatpush1.msra.mxu0 0.0
    %681 = vmatprep.subr.mxu0 0.0
    %682 = vmatpush1.msra.mxu0 0.0
    %683 = vmatprep.subr.mxu0 0.0
    %684 = vmatpush1.msra.mxu0 0.0
    %685 = vmatprep.subr.mxu0 0.0
    %686 = vmatpush1.msra.mxu0 0.0
    %687 = vmatprep.subr.mxu0 0.0
    %688 = vmatpush1.msra.mxu0 0.0
    %689 = vmatprep.subr.mxu0 0.0
    %690 = vmatpush1.msra.mxu0 0.0
    %691 = vmatprep.subr.mxu0 0.0
    %692 = vmatpush1.msra.mxu0 0.0
    %693 = vmatprep.subr.mxu0 0.0
    %694 = vmatpush1.msra.mxu0 0.0
    %695 = vmatprep.subr.mxu0 0.0
    %696 = vmatpush1.msra.mxu0 %v252
    %697 = vmatprep.subr.mxu0 0.0
    %698 = vmatpush1.msra.mxu0 %v251
    %699 = vmatprep.subr.mxu0 0.0
    %700 = vmatpush1.msra.mxu0 %v250
    %701 = vmatprep.subr.mxu0 0.0
    %702 = vmatpush1.msra.mxu0 %v249
    %703 = vmatprep.subr.mxu0 0.0
    %704 = vmatpush2.msra.mxu0 0.0
    %705 = vmatprep.subr.mxu0 0.0
    %706 = vmatpush2.msra.mxu0 0.0
    %707 = vmatprep.subr.mxu0 0.0
    %708 = vmatpush2.msra.mxu0 0.0
    %709 = vmatprep.subr.mxu0 0.0
    %710 = vmatpush2.msra.mxu0 0.0
    %711 = vmatprep.subr.mxu0 0.0
    %712 = vmatpush2.msra.mxu0 0.0
    %713 = vmatprep.subr.mxu0 0.0
    %714 = vmatpush2.msra.mxu0 0.0
    %715 = vmatprep.subr.mxu0 0.0
    %716 = vmatpush2.msra.mxu0 0.0
    %717 = vmatprep.subr.mxu0 0.0
    %718 = vmatpush2.msra.mxu0 0.0
    %719 = vmatprep.subr.mxu0 0.0
    %720 = vmatpush2.msra.mxu0 0.0
    %721 = vmatprep.subr.mxu0 0.0
    %722 = vmatpush2.msra.mxu0 0.0
    %723 = vmatprep.subr.mxu0 0.0
    %724 = vmatpush2.msra.mxu0 0.0
    %725 = vmatprep.subr.mxu0 0.0
    %726 = vmatpush2.msra.mxu0 0.0
    %727 = vmatprep.subr.mxu0 0.0
    %728 = vmatpush2.msra.mxu0 0.0
    %729 = vmatprep.subr.mxu0 0.0
    %730 = vmatpush2.msra.mxu0 0.0
    %731 = vmatprep.subr.mxu0 0.0
    %732 = vmatpush2.msra.mxu0 0.0
    %733 = vmatprep.subr.mxu0 0.0
    %734 = vmatpush2.msra.mxu0 0.0
    %735 = vmatprep.mubr.f32.mxu0 0.0
    %736 = vmatmul.mubr.f32.gmra.mxu0 %v669
    %v737 = vpop.f32.mrf.mxu0
    %v738 = vadd.f32 0.0, %v737
    %v739 = vpop.f32.mrf.mxu0
    %740 = vdwg.mxu0
    %v741 = vadd.f32 %v665, %v738
    %v742 = vxor.u32 %v741, 2147483648
    %v743 = vmul.f32 %v742, 1.442695
    %v744 = vpow.pop %v743
    %v745 = vadd.f32 %v744, 1.0
    %v746 = vrcp.pop %v745
    %v747 = vmul.f32 1.0, %v746
    %v748 = vtanh.pop %v741
    %v749 = vmul.f32 %v747, %v656
    %751 = vrot.lane.b32.xlu0 %v748, 96
    %v752 = vpop.permute.xlu0 %751
    %v754 = vmul.f32 %v747, %v752
    %756 = vrot.lane.b32.xlu0 %v754, 96
    %v757 = vpop.permute.xlu0 %756
    %v759 = vadd.f32 %v749, %v757
    %v760 = vtanh.pop %v759
    %762 = vrot.lane.b32.xlu0 %v760, 96
    %v763 = vpop.permute.xlu0 %762
    %v765 = vmul.f32 %v747, %v763
    %v766 = vmax.f32 %v663, %v765
    %s767 = scalar_lea.vmem [#allocation2], 40
    %v768 = vld [vmem:[%s767] sm:$0xff]
    %770 = vrot.lane.b32.xlu0 %v765, 32
    %v771 = vpop.permute.xlu0 %770
    %v772 = vsel %vm256, %v771, 0
    %774 = vmatprep.subr.mxu0 0.0
    %775 = vmatpush1.msra.mxu0 0.0
    %776 = vmatprep.subr.mxu0 0.0
    %777 = vmatpush1.msra.mxu0 0.0
    %778 = vmatprep.subr.mxu0 0.0
    %779 = vmatpush1.msra.mxu0 0.0
    %780 = vmatprep.subr.mxu0 0.0
    %781 = vmatpush1.msra.mxu0 0.0
    %782 = vmatprep.subr.mxu0 0.0
    %783 = vmatpush1.msra.mxu0 0.0
    %784 = vmatprep.subr.mxu0 0.0
    %785 = vmatpush1.msra.mxu0 0.0
    %786 = vmatprep.subr.mxu0 0.0
    %787 = vmatpush1.msra.mxu0 0.0
    %788 = vmatprep.subr.mxu0 0.0
    %789 = vmatpush1.msra.mxu0 0.0
    %790 = vmatprep.subr.mxu0 0.0
    %791 = vmatpush1.msra.mxu0 0.0
    %792 = vmatprep.subr.mxu0 0.0
    %793 = vmatpush1.msra.mxu0 0.0
    %794 = vmatprep.subr.mxu0 0.0
    %795 = vmatpush1.msra.mxu0 0.0
    %796 = vmatprep.subr.mxu0 0.0
    %797 = vmatpush1.msra.mxu0 0.0
    %798 = vmatprep.subr.mxu0 0.0
    %799 = vmatpush1.msra.mxu0 %v252
    %800 = vmatprep.subr.mxu0 0.0
    %801 = vmatpush1.msra.mxu0 %v251
    %802 = vmatprep.subr.mxu0 0.0
    %803 = vmatpush1.msra.mxu0 %v250
    %804 = vmatprep.subr.mxu0 0.0
    %805 = vmatpush1.msra.mxu0 %v249
    %806 = vmatprep.subr.mxu0 0.0
    %807 = vmatpush2.msra.mxu0 0.0
    %808 = vmatprep.subr.mxu0 0.0
    %809 = vmatpush2.msra.mxu0 0.0
    %810 = vmatprep.subr.mxu0 0.0
    %811 = vmatpush2.msra.mxu0 0.0
    %812 = vmatprep.subr.mxu0 0.0
    %813 = vmatpush2.msra.mxu0 0.0
    %814 = vmatprep.subr.mxu0 0.0
    %815 = vmatpush2.msra.mxu0 0.0
    %816 = vmatprep.subr.mxu0 0.0
    %817 = vmatpush2.msra.mxu0 0.0
    %818 = vmatprep.subr.mxu0 0.0
    %819 = vmatpush2.msra.mxu0 0.0
    %820 = vmatprep.subr.mxu0 0.0
    %821 = vmatpush2.msra.mxu0 0.0
    %822 = vmatprep.subr.mxu0 0.0
    %823 = vmatpush2.msra.mxu0 0.0
    %824 = vmatprep.subr.mxu0 0.0
    %825 = vmatpush2.msra.mxu0 0.0
    %826 = vmatprep.subr.mxu0 0.0
    %827 = vmatpush2.msra.mxu0 0.0
    %828 = vmatprep.subr.mxu0 0.0
    %829 = vmatpush2.msra.mxu0 0.0
    %830 = vmatprep.subr.mxu0 0.0
    %831 = vmatpush2.msra.mxu0 0.0
    %832 = vmatprep.subr.mxu0 0.0
    %833 = vmatpush2.msra.mxu0 0.0
    %834 = vmatprep.subr.mxu0 0.0
    %835 = vmatpush2.msra.mxu0 0.0
    %836 = vmatprep.subr.mxu0 0.0
    %837 = vmatpush2.msra.mxu0 0.0
    %838 = vmatprep.mubr.f32.mxu0 0.0
    %839 = vmatmul.mubr.f32.gmra.mxu0 %v772
    %v840 = vpop.f32.mrf.mxu0
    %v841 = vadd.f32 0.0, %v840
    %v842 = vpop.f32.mrf.mxu0
    %843 = vdwg.mxu0
    %v844 = vadd.f32 %v768, %v841
    %v845 = vxor.u32 %v844, 2147483648
    %v846 = vmul.f32 %v845, 1.442695
    %v847 = vpow.pop %v846
    %v848 = vadd.f32 %v847, 1.0
    %v849 = vrcp.pop %v848
    %v850 = vmul.f32 1.0, %v849
    %v851 = vtanh.pop %v844
    %v852 = vmul.f32 %v850, %v759
    %854 = vrot.lane.b32.xlu0 %v851, 96
    %v855 = vpop.permute.xlu0 %854
    %v857 = vmul.f32 %v850, %v855
    %859 = vrot.lane.b32.xlu0 %v857, 96
    %v860 = vpop.permute.xlu0 %859
    %v862 = vadd.f32 %v852, %v860
    %v863 = vtanh.pop %v862
    %865 = vrot.lane.b32.xlu0 %v863, 96
    %v866 = vpop.permute.xlu0 %865
    %v868 = vmul.f32 %v850, %v866
    %v869 = vmax.f32 %v766, %v868
    %s870 = scalar_lea.vmem [#allocation2], 48
    %v871 = vld [vmem:[%s870] sm:$0xff]
    %873 = vrot.lane.b32.xlu0 %v868, 32
    %v874 = vpop.permute.xlu0 %873
    %v875 = vsel %vm256, %v874, 0
    %877 = vmatprep.subr.mxu0 0.0
    %878 = vmatpush1.msra.mxu0 0.0
    %879 = vmatprep.subr.mxu0 0.0
    %880 = vmatpush1.msra.mxu0 0.0
    %881 = vmatprep.subr.mxu0 0.0
    %882 = vmatpush1.msra.mxu0 0.0
    %883 = vmatprep.subr.mxu0 0.0
    %884 = vmatpush1.msra.mxu0 0.0
    %885 = vmatprep.subr.mxu0 0.0
    %886 = vmatpush1.msra.mxu0 0.0
    %887 = vmatprep.subr.mxu0 0.0
    %888 = vmatpush1.msra.mxu0 0.0
    %889 = vmatprep.subr.mxu0 0.0
    %890 = vmatpush1.msra.mxu0 0.0
    %891 = vmatprep.subr.mxu0 0.0
    %892 = vmatpush1.msra.mxu0 0.0
    %893 = vmatprep.subr.mxu0 0.0
    %894 = vmatpush1.msra.mxu0 0.0
    %895 = vmatprep.subr.mxu0 0.0
    %896 = vmatpush1.msra.mxu0 0.0
    %897 = vmatprep.subr.mxu0 0.0
    %898 = vmatpush1.msra.mxu0 0.0
    %899 = vmatprep.subr.mxu0 0.0
    %900 = vmatpush1.msra.mxu0 0.0
    %901 = vmatprep.subr.mxu0 0.0
    %902 = vmatpush1.msra.mxu0 %v252
    %903 = vmatprep.subr.mxu0 0.0
    %904 = vmatpush1.msra.mxu0 %v251
    %905 = vmatprep.subr.mxu0 0.0
    %906 = vmatpush1.msra.mxu0 %v250
    %907 = vmatprep.subr.mxu0 0.0
    %908 = vmatpush1.msra.mxu0 %v249
    %909 = vmatprep.subr.mxu0 0.0
    %910 = vmatpush2.msra.mxu0 0.0
    %911 = vmatprep.subr.mxu0 0.0
    %912 = vmatpush2.msra.mxu0 0.0
    %913 = vmatprep.subr.mxu0 0.0
    %914 = vmatpush2.msra.mxu0 0.0
    %915 = vmatprep.subr.mxu0 0.0
    %916 = vmatpush2.msra.mxu0 0.0
    %917 = vmatprep.subr.mxu0 0.0
    %918 = vmatpush2.msra.mxu0 0.0
    %919 = vmatprep.subr.mxu0 0.0
    %920 = vmatpush2.msra.mxu0 0.0
    %921 = vmatprep.subr.mxu0 0.0
    %922 = vmatpush2.msra.mxu0 0.0
    %923 = vmatprep.subr.mxu0 0.0
    %924 = vmatpush2.msra.mxu0 0.0
    %925 = vmatprep.subr.mxu0 0.0
    %926 = vmatpush2.msra.mxu0 0.0
    %927 = vmatprep.subr.mxu0 0.0
    %928 = vmatpush2.msra.mxu0 0.0
    %929 = vmatprep.subr.mxu0 0.0
    %930 = vmatpush2.msra.mxu0 0.0
    %931 = vmatprep.subr.mxu0 0.0
    %932 = vmatpush2.msra.mxu0 0.0
    %933 = vmatprep.subr.mxu0 0.0
    %934 = vmatpush2.msra.mxu0 0.0
    %935 = vmatprep.subr.mxu0 0.0
    %936 = vmatpush2.msra.mxu0 0.0
    %937 = vmatprep.subr.mxu0 0.0
    %938 = vmatpush2.msra.mxu0 0.0
    %939 = vmatprep.subr.mxu0 0.0
    %940 = vmatpush2.msra.mxu0 0.0
    %941 = vmatprep.mubr.f32.mxu0 0.0
    %942 = vmatmul.mubr.f32.gmra.mxu0 %v875
    %v943 = vpop.f32.mrf.mxu0
    %v944 = vadd.f32 0.0, %v943
    %v945 = vpop.f32.mrf.mxu0
    %946 = vdwg.mxu0
    %v947 = vadd.f32 %v871, %v944
    %v948 = vxor.u32 %v947, 2147483648
    %v949 = vmul.f32 %v948, 1.442695
    %v950 = vpow.pop %v949
    %v951 = vadd.f32 %v950, 1.0
    %v952 = vrcp.pop %v951
    %v953 = vmul.f32 1.0, %v952
    %v954 = vtanh.pop %v947
    %v955 = vmul.f32 %v953, %v862
    %957 = vrot.lane.b32.xlu0 %v954, 96
    %v958 = vpop.permute.xlu0 %957
    %v960 = vmul.f32 %v953, %v958
    %962 = vrot.lane.b32.xlu0 %v960, 96
    %v963 = vpop.permute.xlu0 %962
    %v965 = vadd.f32 %v955, %v963
    %v966 = vtanh.pop %v965
    %968 = vrot.lane.b32.xlu0 %v966, 96
    %v969 = vpop.permute.xlu0 %968
    %v971 = vmul.f32 %v953, %v969
    %v972 = vmax.f32 %v869, %v971
    %s973 = scalar_lea.vmem [#allocation2], 56
    %v974 = vld [vmem:[%s973] sm:$0xff]
    %976 = vrot.lane.b32.xlu0 %v971, 32
    %v977 = vpop.permute.xlu0 %976
    %v978 = vsel %vm256, %v977, 0
    %980 = vmatprep.subr.mxu0 0.0
    %981 = vmatpush1.msra.mxu0 0.0
    %982 = vmatprep.subr.mxu0 0.0
    %983 = vmatpush1.msra.mxu0 0.0
    %984 = vmatprep.subr.mxu0 0.0
    %985 = vmatpush1.msra.mxu0 0.0
    %986 = vmatprep.subr.mxu0 0.0
    %987 = vmatpush1.msra.mxu0 0.0
    %988 = vmatprep.subr.mxu0 0.0
    %989 = vmatpush1.msra.mxu0 0.0
    %990 = vmatprep.subr.mxu0 0.0
    %991 = vmatpush1.msra.mxu0 0.0
    %992 = vmatprep.subr.mxu0 0.0
    %993 = vmatpush1.msra.mxu0 0.0
    %994 = vmatprep.subr.mxu0 0.0
    %995 = vmatpush1.msra.mxu0 0.0
    %996 = vmatprep.subr.mxu0 0.0
    %997 = vmatpush1.msra.mxu0 0.0
    %998 = vmatprep.subr.mxu0 0.0
    %999 = vmatpush1.msra.mxu0 0.0
    %1000 = vmatprep.subr.mxu0 0.0
    %1001 = vmatpush1.msra.mxu0 0.0
    %1002 = vmatprep.subr.mxu0 0.0
    %1003 = vmatpush1.msra.mxu0 0.0
    %1004 = vmatprep.subr.mxu0 0.0
    %1005 = vmatpush1.msra.mxu0 %v252
    %1006 = vmatprep.subr.mxu0 0.0
    %1007 = vmatpush1.msra.mxu0 %v251
    %1008 = vmatprep.subr.mxu0 0.0
    %1009 = vmatpush1.msra.mxu0 %v250
    %1010 = vmatprep.subr.mxu0 0.0
    %1011 = vmatpush1.msra.mxu0 %v249
    %1012 = vmatprep.subr.mxu0 0.0
    %1013 = vmatpush2.msra.mxu0 0.0
    %1014 = vmatprep.subr.mxu0 0.0
    %1015 = vmatpush2.msra.mxu0 0.0
    %1016 = vmatprep.subr.mxu0 0.0
    %1017 = vmatpush2.msra.mxu0 0.0
    %1018 = vmatprep.subr.mxu0 0.0
    %1019 = vmatpush2.msra.mxu0 0.0
    %1020 = vmatprep.subr.mxu0 0.0
    %1021 = vmatpush2.msra.mxu0 0.0
    %1022 = vmatprep.subr.mxu0 0.0
    %1023 = vmatpush2.msra.mxu0 0.0
    %1024 = vmatprep.subr.mxu0 0.0
    %1025 = vmatpush2.msra.mxu0 0.0
    %1026 = vmatprep.subr.mxu0 0.0
    %1027 = vmatpush2.msra.mxu0 0.0
    %1028 = vmatprep.subr.mxu0 0.0
    %1029 = vmatpush2.msra.mxu0 0.0
    %1030 = vmatprep.subr.mxu0 0.0
    %1031 = vmatpush2.msra.mxu0 0.0
    %1032 = vmatprep.subr.mxu0 0.0
    %1033 = vmatpush2.msra.mxu0 0.0
    %1034 = vmatprep.subr.mxu0 0.0
    %1035 = vmatpush2.msra.mxu0 0.0
    %1036 = vmatprep.subr.mxu0 0.0
    %1037 = vmatpush2.msra.mxu0 0.0
    %1038 = vmatprep.subr.mxu0 0.0
    %1039 = vmatpush2.msra.mxu0 0.0
    %1040 = vmatprep.subr.mxu0 0.0
    %1041 = vmatpush2.msra.mxu0 0.0
    %1042 = vmatprep.subr.mxu0 0.0
    %1043 = vmatpush2.msra.mxu0 0.0
    %1044 = vmatprep.mubr.f32.mxu0 0.0
    %1045 = vmatmul.mubr.f32.gmra.mxu0 %v978
    %v1046 = vpop.f32.mrf.mxu0
    %v1047 = vadd.f32 0.0, %v1046
    %v1048 = vpop.f32.mrf.mxu0
    %1049 = vdwg.mxu0
    %v1050 = vadd.f32 %v974, %v1047
    %v1051 = vxor.u32 %v1050, 2147483648
    %v1052 = vmul.f32 %v1051, 1.442695
    %v1053 = vpow.pop %v1052
    %v1054 = vadd.f32 %v1053, 1.0
    %v1055 = vrcp.pop %v1054
    %v1056 = vmul.f32 1.0, %v1055
    %v1057 = vtanh.pop %v1050
    %v1058 = vmul.f32 %v1056, %v965
    %1060 = vrot.lane.b32.xlu0 %v1057, 96
    %v1061 = vpop.permute.xlu0 %1060
    %v1063 = vmul.f32 %v1056, %v1061
    %1065 = vrot.lane.b32.xlu0 %v1063, 96
    %v1066 = vpop.permute.xlu0 %1065
    %v1068 = vadd.f32 %v1058, %v1066
    %v1069 = vtanh.pop %v1068
    %1071 = vrot.lane.b32.xlu0 %v1069, 96
    %v1072 = vpop.permute.xlu0 %1071
    %v1074 = vmul.f32 %v1056, %v1072
    %v1075 = vmax.f32 %v972, %v1074
    %v1076 = vpack.c.bf16 %v1075, %v1075
    %v1077 = vld [vmem:[#allocation12] sm:$0xf]
    %v1078 = vld [vmem:[#allocation12 + $0x4] sm:$0xf]
    %v1079 = vld [vmem:[#allocation12 + $0x8] sm:$0xf]
    %v1080 = vld [vmem:[#allocation12 + $0xc] sm:$0xf]
    %v1081 = vld [vmem:[%s7] sm:$0x1]
    %v1083 = vlaneseq
    %v1084 = vshrl.u32 %v1083, 7
    %v1085 = vsub.s32 0, %v1084
    %v1086 = vrot.slane %v1081, %v1085
    %1089 = vrot.lane.b32.xlu0 %v1076, 32
    %v1090 = vpop.permute.xlu0 %1089
    %v1095 = vunpack.c.l.b16 %v1077
    %v1096 = vunpack.c.l.b16 %v1078
    %v1097 = vunpack.c.l.b16 %v1079
    %v1098 = vunpack.c.l.b16 %v1080
    %v1099 = vpack.c.b16 %v1096, %v1095
    %v1100 = vpack.c.b16 %v1098, %v1097
    %v1104 = vsel %vm256, %v1090, 0
    %1106 = vmatprep.subr.bf16.mxu0 0
    %1107 = vmatpush1.bf16.msra.mxu0 0
    %1108 = vmatprep.subr.bf16.mxu0 0
    %1109 = vmatpush1.bf16.msra.mxu0 0
    %1110 = vmatprep.subr.bf16.mxu0 0
    %1111 = vmatpush1.bf16.msra.mxu0 0
    %1112 = vmatprep.subr.bf16.mxu0 0
    %1113 = vmatpush1.bf16.msra.mxu0 0
    %1114 = vmatprep.subr.bf16.mxu0 0
    %1115 = vmatpush1.bf16.msra.mxu0 0
    %1116 = vmatprep.subr.bf16.mxu0 0
    %1117 = vmatpush1.bf16.msra.mxu0 0
    %1118 = vmatprep.subr.bf16.mxu0 0
    %1119 = vmatpush1.bf16.msra.mxu0 %v1100
    %1120 = vmatprep.subr.bf16.mxu0 0
    %1121 = vmatpush1.bf16.msra.mxu0 %v1099
    %1122 = vmatprep.subr.bf16.mxu0 0
    %1123 = vmatpush2.bf16.msra.mxu0 0
    %1124 = vmatprep.subr.bf16.mxu0 0
    %1125 = vmatpush2.bf16.msra.mxu0 0
    %1126 = vmatprep.subr.bf16.mxu0 0
    %1127 = vmatpush2.bf16.msra.mxu0 0
    %1128 = vmatprep.subr.bf16.mxu0 0
    %1129 = vmatpush2.bf16.msra.mxu0 0
    %1130 = vmatprep.subr.bf16.mxu0 0
    %1131 = vmatpush2.bf16.msra.mxu0 0
    %1132 = vmatprep.subr.bf16.mxu0 0
    %1133 = vmatpush2.bf16.msra.mxu0 0
    %1134 = vmatprep.subr.bf16.mxu0 0
    %1135 = vmatpush2.bf16.msra.mxu0 0
    %1136 = vmatprep.subr.bf16.mxu0 0
    %1137 = vmatpush2.bf16.msra.mxu0 0
    %1138 = vmatprep.mubr.bf16.mxu0 0
    %1139 = vmatmul.mubr.bf16.gmra.mxu0 %v1104
    %v1140 = vpop.f32.mrf.mxu0
    %v1141 = vadd.f32 %v1086, %v1140
    %v1142 = vpop.f32.mrf.mxu0
    %v1143 = vpop.f32.mrf.mxu0
    %v1144 = vpop.f32.mrf.mxu0
    %1145 = vdwg.mxu0
    %v1146 = vmax.f32 %v1141, 0.0
    %v1147 = vpack.c.bf16 %v1146, %v1146
    %v1148 = vld [vmem:[#allocation14] sm:$0xf]
    %v1149 = vld [vmem:[#allocation14 + $0x4] sm:$0xf]
    %v1150 = vld [vmem:[#allocation14 + $0x8] sm:$0xf]
    %v1151 = vld [vmem:[#allocation14 + $0xc] sm:$0xf]
    %v1152 = vld [vmem:[#allocation14 + $0x10] sm:$0xf]
    %v1153 = vld [vmem:[#allocation14 + $0x14] sm:$0xf]
    %v1154 = vld [vmem:[#allocation14 + $0x18] sm:$0xf]
    %v1155 = vld [vmem:[#allocation14 + $0x1c] sm:$0xf]
    %v1156 = vld [vmem:[#allocation14 + $0x20] sm:$0xf]
    %v1157 = vld [vmem:[#allocation14 + $0x24] sm:$0xf]
    %v1158 = vld [vmem:[#allocation14 + $0x28] sm:$0xf]
    %v1159 = vld [vmem:[#allocation14 + $0x2c] sm:$0xf]
    %v1160 = vld [vmem:[#allocation14 + $0x30] sm:$0xf]
    %v1161 = vld [vmem:[#allocation14 + $0x34] sm:$0xf]
    %v1162 = vld [vmem:[#allocation14 + $0x38] sm:$0xf]
    %v1163 = vld [vmem:[#allocation14 + $0x3c] sm:$0xf]
    %v1164 = vld [vmem:[%s9] sm:$0x1]
    %v1166 = vlaneseq
    %v1167 = vshrl.u32 %v1166, 7
    %v1168 = vsub.s32 0, %v1167
    %v1169 = vrot.slane %v1164, %v1168
    %v1187 = vunpack.c.l.b16 %v1148
    %v1188 = vunpack.c.l.b16 %v1149
    %v1189 = vunpack.c.l.b16 %v1150
    %v1190 = vunpack.c.l.b16 %v1151
    %v1191 = vunpack.c.l.b16 %v1152
    %v1192 = vunpack.c.l.b16 %v1153
    %v1193 = vunpack.c.l.b16 %v1154
    %v1194 = vunpack.c.l.b16 %v1155
    %v1195 = vunpack.c.l.b16 %v1156
    %v1196 = vunpack.c.l.b16 %v1157
    %v1197 = vunpack.c.l.b16 %v1158
    %v1198 = vunpack.c.l.b16 %v1159
    %v1199 = vunpack.c.l.b16 %v1160
    %v1200 = vunpack.c.l.b16 %v1161
    %v1201 = vunpack.c.l.b16 %v1162
    %v1202 = vunpack.c.l.b16 %v1163
    %v1203 = vpack.c.b16 %v1188, %v1187
    %v1204 = vpack.c.b16 %v1190, %v1189
    %v1205 = vpack.c.b16 %v1192, %v1191
    %v1206 = vpack.c.b16 %v1194, %v1193
    %v1207 = vpack.c.b16 %v1196, %v1195
    %v1208 = vpack.c.b16 %v1198, %v1197
    %v1209 = vpack.c.b16 %v1200, %v1199
    %v1210 = vpack.c.b16 %v1202, %v1201
    %1219 = vmatprep.subr.bf16.mxu0 0
    %1220 = vmatpush1.bf16.msra.mxu0 %v1210
    %1221 = vmatprep.subr.bf16.mxu0 0
    %1222 = vmatpush1.bf16.msra.mxu0 %v1209
    %1223 = vmatprep.subr.bf16.mxu0 0
    %1224 = vmatpush1.bf16.msra.mxu0 %v1208
    %1225 = vmatprep.subr.bf16.mxu0 0
    %1226 = vmatpush1.bf16.msra.mxu0 %v1207
    %1227 = vmatprep.subr.bf16.mxu0 0
    %1228 = vmatpush1.bf16.msra.mxu0 %v1206
    %1229 = vmatprep.subr.bf16.mxu0 0
    %1230 = vmatpush1.bf16.msra.mxu0 %v1205
    %1231 = vmatprep.subr.bf16.mxu0 0
    %1232 = vmatpush1.bf16.msra.mxu0 %v1204
    %1233 = vmatprep.subr.bf16.mxu0 0
    %1234 = vmatpush1.bf16.msra.mxu0 %v1203
    %1235 = vmatprep.subr.bf16.mxu0 0
    %1236 = vmatpush2.bf16.msra.mxu0 0
    %1237 = vmatprep.subr.bf16.mxu0 0
    %1238 = vmatpush2.bf16.msra.mxu0 0
    %1239 = vmatprep.subr.bf16.mxu0 0
    %1240 = vmatpush2.bf16.msra.mxu0 0
    %1241 = vmatprep.subr.bf16.mxu0 0
    %1242 = vmatpush2.bf16.msra.mxu0 0
    %1243 = vmatprep.subr.bf16.mxu0 0
    %1244 = vmatpush2.bf16.msra.mxu0 0
    %1245 = vmatprep.subr.bf16.mxu0 0
    %1246 = vmatpush2.bf16.msra.mxu0 0
    %1247 = vmatprep.subr.bf16.mxu0 0
    %1248 = vmatpush2.bf16.msra.mxu0 0
    %1249 = vmatprep.subr.bf16.mxu0 0
    %1250 = vmatpush2.bf16.msra.mxu0 0
    %1251 = vmatprep.mubr.bf16.mxu0 0
    %1252 = vmatmul.mubr.bf16.gmra.mxu0 %v1147
    %v1253 = vpop.f32.mrf.mxu0
    %v1254 = vadd.f32 %v1169, %v1253
    %v1255 = vpop.f32.mrf.mxu0
    %v1256 = vpop.f32.mrf.mxu0
    %v1257 = vpop.f32.mrf.mxu0
    %1258 = vdwg.mxu0
    %v1259 = vxor.u32 %v1254, 2147483648
    %v1260 = vmul.f32 %v1259, 1.442695
    %v1261 = vpow.pop %v1260
    %v1262 = vadd.f32 %v1261, 1.0
    %v1263 = vrcp.pop %v1262
    %v1264 = vmul.f32 1.0, %v1263
    %1265 = vst [vmem:[#allocation15] sm:$0xff] %v1264
    // Predicated region
    $region70: #{tpu_custom_call.1} parent=1 // pred_check
      _
    $region71: #{tpu_custom_call.1} parent=1 // pred_check_branch
      %1267 = sbr.rel (0) target = $region73
    $region72: #{tpu_custom_call.1} parent=1 // pred_region
      %s1269 = ssub.s32 128, 128
      %1270 = vsyncadd [#allocation5], %s1269
      %s1272 = sshll.u32 [#allocation15], 4
      %s1273 = int_to_ptr.vmem [resolvable:$true] %s1272
      %1275 = dma.vmem_to_hbm [thread:$0]  %s1273, 128, %s10, [#allocation5]
    $region73: #{tpu_custom_call.1} parent=1 // pred_fallthru
      _
    // Predicated region
    $region74: #{tpu_custom_call.1} parent=1 // pred_check
      _
    $region75: #{tpu_custom_call.1} parent=1 // pred_check_branch
      %1277 = sbr.rel (0) target = $region77
    $region76: #{tpu_custom_call.1} parent=1 // pred_region
      %1278 = dma.done [#allocation5], 128
    $region77: #{tpu_custom_call.1} parent=1 // pred_fallthru
      _
    %1279 = vsyncpa [#allocation4], 1
    %1280 = vsyncpa [#allocation7], 1
    %1281 = vsyncpa [#allocation10], 1
    %1282 = vsyncpa [#allocation13], 1
    %1283 = vsyncpa [#allocation5], 1

</llo_original>
